<compile_context>
chip_gen: v7x
topology: tpu7x:2x2x1
jax: 0.10.0
libtpu: 0.0.40
codegen_flags: <defaults>
</compile_context>

<pallas_src>
import functools

import jax
import jax.numpy as jnp
from jax.experimental import pallas as pl
from jax.experimental.pallas import tpu as pltpu


LN_EPS = 1e-5          # nn.LayerNorm default eps
LEAKY_SLOPE = 0.01     # F.leaky_relu default negative_slope
LANE = 128             # padded feature width == TPU lane count


def _round_up(n, m):
    return (n + m - 1) // m * m


def _tile_batch(batch, block_m):
    """Pick a batch tile: as large as possible (<= block_m) but keep >= 2 tiles
    for realistic batches so the 'parallel' grid axis feeds both v7x cores."""
    half = _round_up(max((batch + 1) // 2, 1), 8)
    bm = max(8, min(block_m, half))
    b_pad = _round_up(batch, bm)
    return bm, b_pad


# ---------------------------------------------------------------------------
# Per-tile forward: full MLP on one (bm, LANE) activation tile (traced in-kernel)
# ---------------------------------------------------------------------------
def _mlp_tile(x, w_ref, b_ref, g_ref, beta_ref, mask, *, num_hidden_layers, inv_h):
    """x:        [bm, LANE] f32 activation tile, padded lanes exactly zero
       w_ref:    [L+1, LANE, LANE] bf16 stacked zero-padded weights (VMEM resident)
       b_ref:    [L+1, 1, LANE]    f32 stacked zero-padded biases
       g_ref:    [max(L,1), 1, LANE] f32 LayerNorm gamma (zero in padded lanes)
       beta_ref: [max(L,1), 1, LANE] f32 LayerNorm beta  (zero in padded lanes)
       mask:     [1, LANE] f32, 1.0 on the true hidden lanes
       Invariant: padded lanes stay exactly zero through every layer (zero
       weight columns, zero bias/gamma/beta), so tanh(0)=0 on output and Euler
       updates keep the padding stable.
    """
    # Hidden layers: linear (bf16 x bf16 -> f32 acc) -> masked LayerNorm -> leaky_relu.
    for i in range(num_hidden_layers):                # static unroll (L is small)
        y = jnp.dot(x.astype(jnp.bfloat16), w_ref[i],
                    preferred_element_type=jnp.float32) + b_ref[i]
        # Padded lanes of y are exactly zero, so the full-lane sum equals the
        # sum over the true hidden lanes.
        mean = jnp.sum(y, axis=-1, keepdims=True) * inv_h
        centered = (y - mean) * mask                  # zero out padded lanes
        var = jnp.sum(centered * centered, axis=-1, keepdims=True) * inv_h
        yn = centered * jax.lax.rsqrt(var + LN_EPS) * g_ref[i] + beta_ref[i]
        x = jnp.maximum(yn, LEAKY_SLOPE * yn)         # leaky_relu, padded lanes stay 0

    # Final layer: linear -> tanh (LayerNorm is Identity here).
    y = jnp.dot(x.astype(jnp.bfloat16), w_ref[num_hidden_layers],
                preferred_element_type=jnp.float32) + b_ref[num_hidden_layers]
    return jnp.tanh(y)


def _lane_mask(num_hidden):
    iota = jax.lax.broadcasted_iota(jnp.int32, (1, LANE), 1)
    return (iota < num_hidden).astype(jnp.float32)


# ---------------------------------------------------------------------------
# Kernels
# ---------------------------------------------------------------------------
def _fused_mlp_kernel(x_ref, w_ref, b_ref, g_ref, beta_ref, o_ref, *,
                      num_hidden_layers, num_hidden):
    mask = _lane_mask(num_hidden)                     # hoisted out of the layer loop
    out = _mlp_tile(x_ref[...], w_ref, b_ref, g_ref, beta_ref, mask,
                    num_hidden_layers=num_hidden_layers,
                    inv_h=1.0 / float(num_hidden))
    o_ref[...] = out.astype(o_ref.dtype)


def _fused_euler_kernel(x_ref, w_ref, b_ref, g_ref, beta_ref, o_ref, *,
                        num_hidden_layers, num_hidden, num_steps, dt):
    """Explicit Euler: x_{n+1} = x_n + dt * f(x_n), all steps in one kernel.
    Weights stay VMEM-resident; the state never leaves the padded layout."""
    mask = _lane_mask(num_hidden)
    inv_h = 1.0 / float(num_hidden)
    x = x_ref[...]
    for _ in range(num_steps):                        # static unroll; num_steps is small
        f = _mlp_tile(x, w_ref, b_ref, g_ref, beta_ref, mask,
                      num_hidden_layers=num_hidden_layers, inv_h=inv_h)
        x = x + dt * f                                # padded lanes: 0 + dt*0 = 0
    o_ref[...] = x.astype(o_ref.dtype)


# ---------------------------------------------------------------------------
# pallas_call builder shared by the forward and the fused Euler solver
# ---------------------------------------------------------------------------
def _build_call(kernel_body, bm, b_pad, n_tot, n_ln):
    return pl.pallas_call(
        kernel_body,
        out_shape=jax.ShapeDtypeStruct((b_pad, LANE), jnp.float32),
        grid=(b_pad // bm,),
        in_specs=[
            pl.BlockSpec((bm, LANE), lambda i: (i, 0)),            # x tile (per grid step)
            pl.BlockSpec((n_tot, LANE, LANE), lambda i: (0, 0, 0)),  # weights: resident
            pl.BlockSpec((n_tot, 1, LANE), lambda i: (0, 0, 0)),     # biases:  resident
            pl.BlockSpec((n_ln, 1, LANE), lambda i: (0, 0, 0)),      # LN gamma: resident
            pl.BlockSpec((n_ln, 1, LANE), lambda i: (0, 0, 0)),      # LN beta:  resident
        ],
        out_specs=pl.BlockSpec((bm, LANE), lambda i: (i, 0)),
        compiler_params=pltpu.CompilerParams(
            dimension_semantics=("parallel",)),        # v7x: split batch across TCs
    )


# ---------------------------------------------------------------------------
# Parameter construction (mirrors the module's __init__ shapes) + packing
# ---------------------------------------------------------------------------
def init_params(key, latent_dim, num_hidden, num_layers):
    """Raw (unpadded) parameters, same shapes as the PyTorch module."""
    layers_dim = [latent_dim] + num_layers * [num_hidden] + [latent_dim]
    params = []
    for i, (n_in, n_out) in enumerate(zip(layers_dim[:-1], layers_dim[1:])):
        key, kw, kb = jax.random.split(key, 3)
        w = jax.random.normal(kw, (n_in, n_out), dtype=jnp.float32)  # torch.randn([n_in, n_out])
        b = jax.random.normal(kb, (n_out,), dtype=jnp.float32)       # torch.randn([n_out])
        if i < num_layers:
            gamma = jnp.ones((n_out,), dtype=jnp.float32)            # LayerNorm weight
            beta = jnp.zeros((n_out,), dtype=jnp.float32)            # LayerNorm bias
            params.append(("hidden", w, b, gamma, beta))
        else:
            params.append(("final", w, b))
    return params


def pack_params(params, latent_dim, num_hidden, num_layers):
    """Stack + zero-pad all parameters to lane-dense [*, LANE(, LANE)] slabs.
    Weights are stored bf16 (MXU operands); biases/LN params stay f32.
    INVARIANT: padded rows/columns/entries must remain exactly zero — the
    masked LayerNorm statistics in the kernel rely on it."""
    assert latent_dim <= LANE and num_hidden <= LANE, (
        "pack_params only supports latent_dim/num_hidden <= 128; "
        "generalize to multiple lane tiles for wider layers")
    P = LANE
    n_tot = num_layers + 1
    ws = jnp.zeros((n_tot, P, P), jnp.float32)
    bs = jnp.zeros((n_tot, 1, P), jnp.float32)
    n_ln = max(num_layers, 1)
    gs = jnp.zeros((n_ln, 1, P), jnp.float32)
    betas = jnp.zeros((n_ln, 1, P), jnp.float32)
    for i, p in enumerate(params):
        w, b = p[1], p[2]
        n_in, n_out = w.shape
        ws = ws.at[i, :n_in, :n_out].set(w)
        bs = bs.at[i, 0, :n_out].set(b)
        if p[0] == "hidden":
            gs = gs.at[i, 0, :n_out].set(p[3])
            betas = betas.at[i, 0, :n_out].set(p[4])
    return {"w": ws.astype(jnp.bfloat16), "b": bs, "gamma": gs, "beta": betas,
            "latent_dim": latent_dim, "num_hidden": num_hidden,
            "num_layers": num_layers}


# ---------------------------------------------------------------------------
# Public entry points
# ---------------------------------------------------------------------------
def ode_func_forward(t, x, packed, *, block_m=512):
    """Equivalent of DeterministicODEFunction.forward(t, x): one derivative eval."""
    del t  # t is unused in the reference forward
    D = packed["latent_dim"]
    H = packed["num_hidden"]
    L = packed["num_layers"]
    B = x.shape[0]
    if B == 0:
        return jnp.zeros((0, D), jnp.float32)

    bm, b_pad = _tile_batch(B, block_m)
    x_p = jnp.pad(x.astype(jnp.float32), ((0, b_pad - B), (0, LANE - D)))

    kernel = functools.partial(_fused_mlp_kernel,
                               num_hidden_layers=L, num_hidden=H)
    out = _build_call(kernel, bm, b_pad, L + 1, packed["gamma"].shape[0])(
        x_p, packed["w"], packed["b"], packed["gamma"], packed["beta"])
    return out[:B, :D]


def ode_euler_solve(x, packed, *, num_steps, dt, block_m=512):
    """Explicit-Euler ODE solve fused into ONE pallas_call: num_steps derivative
    evaluations with weights resident in VMEM and the state kept in the padded
    layout for the whole integration (pad once, unpad once)."""
    D = packed["latent_dim"]
    H = packed["num_hidden"]
    L = packed["num_layers"]
    B = x.shape[0]
    if B == 0:
        return jnp.zeros((0, D), jnp.float32)

    bm, b_pad = _tile_batch(B, block_m)
    x_p = jnp.pad(x.astype(jnp.float32), ((0, b_pad - B), (0, LANE - D)))

    kernel = functools.partial(_fused_euler_kernel,
                               num_hidden_layers=L, num_hidden=H,
                               num_steps=int(num_steps), dt=float(dt))
    out = _build_call(kernel, bm, b_pad, L + 1, packed["gamma"].shape[0])(
        x_p, packed["w"], packed["b"], packed["gamma"], packed["beta"])
    return out[:B, :D]


# ---------------------------------------------------------------------------
# Pure-JAX reference (unpadded) for sanity checks
# ---------------------------------------------------------------------------
def ode_func_reference(t, x, params, matmul_dtype=jnp.float32):
    del t
    for p in params:
        if p[0] == "hidden":
            _, w, b, g, beta = p
            y = jnp.dot(x.astype(matmul_dtype), w.astype(matmul_dtype),
                        preferred_element_type=jnp.float32) + b
            mean = jnp.mean(y, axis=-1, keepdims=True)
            var = jnp.mean((y - mean) ** 2, axis=-1, keepdims=True)
            yn = (y - mean) / jnp.sqrt(var + LN_EPS) * g + beta
            x = jnp.where(yn >= 0, yn, LEAKY_SLOPE * yn)
        else:
            _, w, b = p
            y = jnp.dot(x.astype(matmul_dtype), w.astype(matmul_dtype),
                        preferred_element_type=jnp.float32) + b
            x = jnp.tanh(y)
    return x


if __name__ == "__main__":
    # Config consistent with the module: args.latent_dim, args.num_hidden, args.num_layers.
    LATENT_DIM = 8
    NUM_HIDDEN = 32
    NUM_LAYERS = 2
    BATCH = 256        # many ODE states per call so the fused kernel has real work
    NUM_STEPS = 4
    DT = 0.05

    key = jax.random.PRNGKey(0)
    key, kx = jax.random.split(key)
    x = jax.random.normal(kx, (BATCH, LATENT_DIM), dtype=jnp.float32)
    t = jnp.float32(0.0)

    params = init_params(key, LATENT_DIM, NUM_HIDDEN, NUM_LAYERS)
    packed = pack_params(params, LATENT_DIM, NUM_HIDDEN, NUM_LAYERS)

    # ---- single derivative evaluation (the module's forward) ----------------
    out = jax.block_until_ready(ode_func_forward(t, x, packed))
    assert out.shape == (BATCH, LATENT_DIM), out.shape
    # Compare against a reference using the same bf16 matmul operands / f32 accumulation.
    ref = ode_func_reference(t, x, params, matmul_dtype=jnp.bfloat16)
    assert jnp.allclose(out, ref, atol=2e-3, rtol=2e-3), \
        "Pallas forward mismatch vs bf16-matched reference"

    # ---- fused multi-step Euler integration (weights resident across steps) -
    traj = jax.block_until_ready(
        ode_euler_solve(x, packed, num_steps=NUM_STEPS, dt=DT))
    x_ref = x
    for _ in range(NUM_STEPS):
        x_ref = x_ref + DT * ode_func_reference(t, x_ref, params,
                                                matmul_dtype=jnp.bfloat16)
    assert traj.shape == (BATCH, LATENT_DIM), traj.shape
    assert jnp.allclose(traj, x_ref, atol=5e-3, rtol=5e-3), \
        "Pallas fused Euler mismatch vs bf16-matched reference"

    print("KERNEL_OK")
</pallas_src>

<mosaic_0001>
module attributes {stable_mosaic.version = 11 : i64} {
  func.func @_fused_mlp_kernel(%arg0: i32, %arg1: memref<128x128xf32, #tpu.memory_space<vmem>>, %arg2: memref<3x128x128xbf16, #tpu.memory_space<vmem>>, %arg3: memref<3x1x128xf32, #tpu.memory_space<vmem>>, %arg4: memref<2x1x128xf32, #tpu.memory_space<vmem>>, %arg5: memref<2x1x128xf32, #tpu.memory_space<vmem>>, %arg6: memref<128x128xf32, #tpu.memory_space<vmem>>) attributes {dimension_semantics = [#tpu.dimension_semantics<parallel>], iteration_bounds = array<i64: 2>, scalar_prefetch = 0 : i64, scratch_operands = 0 : i64, tpu.core_type = #tpu.core_type<tc>, window_params = [{transform_indices = @transform_0, window_bounds = array<i64: 128, 128>}, {pipeline_mode = #tpu.pipeline_mode<synchronous>, transform_indices = @transform_1, window_bounds = array<i64: 3, 128, 128>}, {pipeline_mode = #tpu.pipeline_mode<synchronous>, transform_indices = @transform_2, window_bounds = array<i64: 3, 1, 128>}, {pipeline_mode = #tpu.pipeline_mode<synchronous>, transform_indices = @transform_3, window_bounds = array<i64: 2, 1, 128>}, {pipeline_mode = #tpu.pipeline_mode<synchronous>, transform_indices = @transform_4, window_bounds = array<i64: 2, 1, 128>}, {transform_indices = @transform_5, window_bounds = array<i64: 128, 128>}]} {
    %0 = tpu.iota {dimensions = array<i32: 1>} : vector<1x128xi32>
    %c32_i32 = arith.constant 32 : i32
    %1 = vector.broadcast %c32_i32 : i32 to vector<1x128xi32>
    %2 = arith.cmpi slt, %0, %1 : vector<1x128xi32>
    %3 = arith.extui %2 : vector<1x128xi1> to vector<1x128xi32>
    %4 = arith.sitofp %3 : vector<1x128xi32> to vector<1x128xf32>
    %c0 = arith.constant 0 : index
    %c0_0 = arith.constant 0 : index
    %5 = vector.load %arg1[%c0, %c0_0] : memref<128x128xf32, #tpu.memory_space<vmem>>, vector<128x128xf32>
    %6 = arith.truncf %5 : vector<128x128xf32> to vector<128x128xbf16>
    %c0_1 = arith.constant 0 : index
    %c0_2 = arith.constant 0 : index
    %c0_3 = arith.constant 0 : index
    %7 = vector.load %arg2[%c0_1, %c0_2, %c0_3] : memref<3x128x128xbf16, #tpu.memory_space<vmem>>, vector<1x128x128xbf16>
    %8 = vector.shape_cast %7 : vector<1x128x128xbf16> to vector<128x128xbf16>
    %cst = arith.constant dense<0.000000e+00> : vector<128x128xf32>
    %9 = tpu.matmul %6, %8, %cst {dimension_numbers = #tpu.dot_dimension_numbers<[1], [0], [0], [1], [0, 0, 1, 1], [], []>} : vector<128x128xbf16>, vector<128x128xbf16>, vector<128x128xf32> -> vector<128x128xf32>
    %c0_4 = arith.constant 0 : index
    %c0_5 = arith.constant 0 : index
    %c0_6 = arith.constant 0 : index
    %10 = vector.load %arg3[%c0_4, %c0_5, %c0_6] : memref<3x1x128xf32, #tpu.memory_space<vmem>>, vector<1x1x128xf32>
    %11 = vector.shape_cast %10 : vector<1x1x128xf32> to vector<1x128xf32>
    %12 = vector.broadcast %11 : vector<1x128xf32> to vector<128x128xf32>
    %13 = arith.addf %9, %12 : vector<128x128xf32>
    %cst_7 = arith.constant dense<0.000000e+00> : vector<128xf32>
    %14 = vector.multi_reduction <add>, %13, %cst_7 [1] : vector<128x128xf32> to vector<128xf32>
    %15 = vector.shape_cast %14 : vector<128xf32> to vector<128x1xf32>
    %cst_8 = arith.constant 3.125000e-02 : f32
    %16 = vector.broadcast %cst_8 : f32 to vector<128x1xf32>
    %17 = arith.mulf %15, %16 : vector<128x1xf32>
    %18 = vector.broadcast %17 : vector<128x1xf32> to vector<128x128xf32>
    %19 = arith.subf %13, %18 : vector<128x128xf32>
    %20 = vector.broadcast %4 : vector<1x128xf32> to vector<128x128xf32>
    %21 = arith.mulf %19, %20 : vector<128x128xf32>
    %22 = arith.mulf %21, %21 : vector<128x128xf32>
    %cst_9 = arith.constant dense<0.000000e+00> : vector<128xf32>
    %23 = vector.multi_reduction <add>, %22, %cst_9 [1] : vector<128x128xf32> to vector<128xf32>
    %24 = vector.shape_cast %23 : vector<128xf32> to vector<128x1xf32>
    %cst_10 = arith.constant 3.125000e-02 : f32
    %25 = vector.broadcast %cst_10 : f32 to vector<128x1xf32>
    %26 = arith.mulf %24, %25 : vector<128x1xf32>
    %cst_11 = arith.constant 9.99999974E-6 : f32
    %27 = vector.broadcast %cst_11 : f32 to vector<128x1xf32>
    %28 = arith.addf %26, %27 : vector<128x1xf32>
    %29 = math.rsqrt %28 : vector<128x1xf32>
    %30 = vector.broadcast %29 : vector<128x1xf32> to vector<128x128xf32>
    %31 = arith.mulf %21, %30 : vector<128x128xf32>
    %c0_12 = arith.constant 0 : index
    %c0_13 = arith.constant 0 : index
    %c0_14 = arith.constant 0 : index
    %32 = vector.load %arg4[%c0_12, %c0_13, %c0_14] : memref<2x1x128xf32, #tpu.memory_space<vmem>>, vector<1x1x128xf32>
    %33 = vector.shape_cast %32 : vector<1x1x128xf32> to vector<1x128xf32>
    %34 = vector.broadcast %33 : vector<1x128xf32> to vector<128x128xf32>
    %35 = arith.mulf %31, %34 : vector<128x128xf32>
    %c0_15 = arith.constant 0 : index
    %c0_16 = arith.constant 0 : index
    %c0_17 = arith.constant 0 : index
    %36 = vector.load %arg5[%c0_15, %c0_16, %c0_17] : memref<2x1x128xf32, #tpu.memory_space<vmem>>, vector<1x1x128xf32>
    %37 = vector.shape_cast %36 : vector<1x1x128xf32> to vector<1x128xf32>
    %38 = vector.broadcast %37 : vector<1x128xf32> to vector<128x128xf32>
    %39 = arith.addf %35, %38 : vector<128x128xf32>
    %cst_18 = arith.constant 0.00999999977 : f32
    %40 = vector.broadcast %cst_18 : f32 to vector<128x128xf32>
    %41 = arith.mulf %40, %39 : vector<128x128xf32>
    %42 = arith.maximumf %39, %41 : vector<128x128xf32>
    %43 = arith.truncf %42 : vector<128x128xf32> to vector<128x128xbf16>
    %c1 = arith.constant 1 : index
    %c0_19 = arith.constant 0 : index
    %c0_20 = arith.constant 0 : index
    %44 = vector.load %arg2[%c1, %c0_19, %c0_20] : memref<3x128x128xbf16, #tpu.memory_space<vmem>>, vector<1x128x128xbf16>
    %45 = vector.shape_cast %44 : vector<1x128x128xbf16> to vector<128x128xbf16>
    %cst_21 = arith.constant dense<0.000000e+00> : vector<128x128xf32>
    %46 = tpu.matmul %43, %45, %cst_21 {dimension_numbers = #tpu.dot_dimension_numbers<[1], [0], [0], [1], [0, 0, 1, 1], [], []>} : vector<128x128xbf16>, vector<128x128xbf16>, vector<128x128xf32> -> vector<128x128xf32>
    %c1_22 = arith.constant 1 : index
    %c0_23 = arith.constant 0 : index
    %c0_24 = arith.constant 0 : index
    %47 = vector.load %arg3[%c1_22, %c0_23, %c0_24] : memref<3x1x128xf32, #tpu.memory_space<vmem>>, vector<1x1x128xf32>
    %48 = vector.shape_cast %47 : vector<1x1x128xf32> to vector<1x128xf32>
    %49 = vector.broadcast %48 : vector<1x128xf32> to vector<128x128xf32>
    %50 = arith.addf %46, %49 : vector<128x128xf32>
    %cst_25 = arith.constant dense<0.000000e+00> : vector<128xf32>
    %51 = vector.multi_reduction <add>, %50, %cst_25 [1] : vector<128x128xf32> to vector<128xf32>
    %52 = vector.shape_cast %51 : vector<128xf32> to vector<128x1xf32>
    %cst_26 = arith.constant 3.125000e-02 : f32
    %53 = vector.broadcast %cst_26 : f32 to vector<128x1xf32>
    %54 = arith.mulf %52, %53 : vector<128x1xf32>
    %55 = vector.broadcast %54 : vector<128x1xf32> to vector<128x128xf32>
    %56 = arith.subf %50, %55 : vector<128x128xf32>
    %57 = vector.broadcast %4 : vector<1x128xf32> to vector<128x128xf32>
    %58 = arith.mulf %56, %57 : vector<128x128xf32>
    %59 = arith.mulf %58, %58 : vector<128x128xf32>
    %cst_27 = arith.constant dense<0.000000e+00> : vector<128xf32>
    %60 = vector.multi_reduction <add>, %59, %cst_27 [1] : vector<128x128xf32> to vector<128xf32>
    %61 = vector.shape_cast %60 : vector<128xf32> to vector<128x1xf32>
    %cst_28 = arith.constant 3.125000e-02 : f32
    %62 = vector.broadcast %cst_28 : f32 to vector<128x1xf32>
    %63 = arith.mulf %61, %62 : vector<128x1xf32>
    %cst_29 = arith.constant 9.99999974E-6 : f32
    %64 = vector.broadcast %cst_29 : f32 to vector<128x1xf32>
    %65 = arith.addf %63, %64 : vector<128x1xf32>
    %66 = math.rsqrt %65 : vector<128x1xf32>
    %67 = vector.broadcast %66 : vector<128x1xf32> to vector<128x128xf32>
    %68 = arith.mulf %58, %67 : vector<128x128xf32>
    %c1_30 = arith.constant 1 : index
    %c0_31 = arith.constant 0 : index
    %c0_32 = arith.constant 0 : index
    %69 = vector.load %arg4[%c1_30, %c0_31, %c0_32] : memref<2x1x128xf32, #tpu.memory_space<vmem>>, vector<1x1x128xf32>
    %70 = vector.shape_cast %69 : vector<1x1x128xf32> to vector<1x128xf32>
    %71 = vector.broadcast %70 : vector<1x128xf32> to vector<128x128xf32>
    %72 = arith.mulf %68, %71 : vector<128x128xf32>
    %c1_33 = arith.constant 1 : index
    %c0_34 = arith.constant 0 : index
    %c0_35 = arith.constant 0 : index
    %73 = vector.load %arg5[%c1_33, %c0_34, %c0_35] : memref<2x1x128xf32, #tpu.memory_space<vmem>>, vector<1x1x128xf32>
    %74 = vector.shape_cast %73 : vector<1x1x128xf32> to vector<1x128xf32>
    %75 = vector.broadcast %74 : vector<1x128xf32> to vector<128x128xf32>
    %76 = arith.addf %72, %75 : vector<128x128xf32>
    %cst_36 = arith.constant 0.00999999977 : f32
    %77 = vector.broadcast %cst_36 : f32 to vector<128x128xf32>
    %78 = arith.mulf %77, %76 : vector<128x128xf32>
    %79 = arith.maximumf %76, %78 : vector<128x128xf32>
    %80 = arith.truncf %79 : vector<128x128xf32> to vector<128x128xbf16>
    %c2 = arith.constant 2 : index
    %c0_37 = arith.constant 0 : index
    %c0_38 = arith.constant 0 : index
    %81 = vector.load %arg2[%c2, %c0_37, %c0_38] : memref<3x128x128xbf16, #tpu.memory_space<vmem>>, vector<1x128x128xbf16>
    %82 = vector.shape_cast %81 : vector<1x128x128xbf16> to vector<128x128xbf16>
    %cst_39 = arith.constant dense<0.000000e+00> : vector<128x128xf32>
    %83 = tpu.matmul %80, %82, %cst_39 {dimension_numbers = #tpu.dot_dimension_numbers<[1], [0], [0], [1], [0, 0, 1, 1], [], []>} : vector<128x128xbf16>, vector<128x128xbf16>, vector<128x128xf32> -> vector<128x128xf32>
    %c2_40 = arith.constant 2 : index
    %c0_41 = arith.constant 0 : index
    %c0_42 = arith.constant 0 : index
    %84 = vector.load %arg3[%c2_40, %c0_41, %c0_42] : memref<3x1x128xf32, #tpu.memory_space<vmem>>, vector<1x1x128xf32>
    %85 = vector.shape_cast %84 : vector<1x1x128xf32> to vector<1x128xf32>
    %86 = vector.broadcast %85 : vector<1x128xf32> to vector<128x128xf32>
    %87 = arith.addf %83, %86 : vector<128x128xf32>
    %88 = math.tanh %87 : vector<128x128xf32>
    %c0_43 = arith.constant 0 : index
    %c0_44 = arith.constant 0 : index
    %89 = vector.load %arg6[%c0_43, %c0_44] : memref<128x128xf32, #tpu.memory_space<vmem>>, vector<128x128xf32>
    tpu.vector_store %arg6[%c0_43, %c0_44], %88 {strides = array<i32>} : memref<128x128xf32, #tpu.memory_space<vmem>>, vector<128x128xf32>,
    return
  }
  func.func @transform_0(%arg0: i32) -> (i32, i32) {
    %c0_i32 = arith.constant 0 : i32
    %c0_i32_0 = arith.constant 0 : i32
    return %arg0, %c0_i32 : i32, i32
  }
  func.func @transform_1(%arg0: i32) -> (i32, i32, i32) {
    %c0_i32 = arith.constant 0 : i32
    %c0_i32_0 = arith.constant 0 : i32
    %c0_i32_1 = arith.constant 0 : i32
    %c0_i32_2 = arith.constant 0 : i32
    return %c0_i32, %c0_i32_0, %c0_i32_1 : i32, i32, i32
  }
  func.func @transform_2(%arg0: i32) -> (i32, i32, i32) {
    %c0_i32 = arith.constant 0 : i32
    %c0_i32_0 = arith.constant 0 : i32
    %c0_i32_1 = arith.constant 0 : i32
    %c0_i32_2 = arith.constant 0 : i32
    return %c0_i32, %c0_i32_0, %c0_i32_1 : i32, i32, i32
  }
  func.func @transform_3(%arg0: i32) -> (i32, i32, i32) {
    %c0_i32 = arith.constant 0 : i32
    %c0_i32_0 = arith.constant 0 : i32
    %c0_i32_1 = arith.constant 0 : i32
    %c0_i32_2 = arith.constant 0 : i32
    return %c0_i32, %c0_i32_0, %c0_i32_1 : i32, i32, i32
  }
  func.func @transform_4(%arg0: i32) -> (i32, i32, i32) {
    %c0_i32 = arith.constant 0 : i32
    %c0_i32_0 = arith.constant 0 : i32
    %c0_i32_1 = arith.constant 0 : i32
    %c0_i32_2 = arith.constant 0 : i32
    return %c0_i32, %c0_i32_0, %c0_i32_1 : i32, i32, i32
  }
  func.func @transform_5(%arg0: i32) -> (i32, i32) {
    %c0_i32 = arith.constant 0 : i32
    %c0_i32_0 = arith.constant 0 : i32
    return %arg0, %c0_i32 : i32, i32
  }
}

</mosaic_0001>

<llo_original>
// kernel: tpu_custom_call.1
$region0: #{tpu_custom_call.1}
  #allocation0 [shape = 'u32[]', space=smem, size = 0x4, offset = 0x4, fixed_abs, tag = 'smem constant byte address 0x4 - core index']
  #allocation1 [shape = 'u32[144,128]{1,0:T(1,128)}', space=vmem, size = 0x12000, scoped, tag = 'internal scratch']
  %s0 = inlined_call_operand.hbm [shape: f32[256,128], index: 0, kind: input, shape index: {}]
  %s1 = inlined_call_operand.hbm [shape: bf16[3,128,128], index: 1, kind: input, shape index: {}]
  %s2 = inlined_call_operand.vmem [shape: f32[3,1,128], index: 2, kind: input, shape index: {}]
  %s3 = inlined_call_operand.vmem [shape: f32[2,1,128], index: 3, kind: input, shape index: {}]
  %s4 = inlined_call_operand.vmem [shape: f32[2,1,128], index: 4, kind: input, shape index: {}]
  %s5 = inlined_call_operand.hbm [shape: f32[256,128], index: 5, kind: output, shape index: {}]
  %s6 = sld [smem:[#allocation0]]
  $region61: #{tpu_custom_call.1} parent=0
    _
  %s8 = ssub.s32 1, %s6
  %s9 = scalar_select 0, %s8, %s6
  $region1: #{tpu_custom_call.1} parent=0
    #allocation2 [shape = 'u8[131072]{0}', space=vmem, size = 0x20000, scoped, tag = 'input window, operand 0']
    #allocation3 [shape = 's32[2]{0}', space=sflag, size = 0x8, scoped, tag = 'scoped memory for tpu_custom_call.1']
    #allocation4 [shape = 's32[2]{0}', space=sflag, size = 0x8, scoped, tag = 'scoped memory for tpu_custom_call.1']
    #allocation5 [shape = 'u8[98304]{0}', space=vmem, size = 0x18000, scoped, tag = 'input window, operand 1, single buffered']
    #allocation6 [shape = 's32[1]{0}', space=sflag, size = 0x4, scoped, tag = 'scoped memory for tpu_custom_call.1']
    #allocation7 [shape = 'u8[131072]{0}', space=vmem, size = 0x20000, scoped, tag = 'output window, operand 0']
    %10 = vsyncpa [#allocation3], 0
    %s11 = scalar_lea.sflag [#allocation3], 1
    %12 = vsyncpa %s11, 0
    %13 = vsyncpa [#allocation6], 0
    %14 = vsyncpa [#allocation4], 0
    %s15 = scalar_lea.sflag [#allocation4], 1
    %16 = vsyncpa %s15, 0
    loop: start=0, step=1, limit=4
    $region2: #{tpu_custom_call.1} parent=1 // loop_pre_header
      _
    $region3: #{tpu_custom_call.1} parent=1 // loop_header
      %s18 = sphi 0, %s22
      %p19 = scmp.ge.s32.totalorder %s18, 4
      %s28 = sphi 0, %s30
      %s31 = sphi 0, %s28
      %s32 = sphi 0, %s31
      %s48 = sphi 0, %s32
      %s52 = sphi 0, %s52
      %s54 = sphi 0, %s52
      %s55 = sphi 0, %s54
      %s69 = sphi 0, %s55
      %s73 = sphi 0, %s73
      %s75 = sphi 0, %s73
      %s76 = sphi 0, %s75
      %s90 = sphi 0, %s76
      %s94 = sphi 0, %s94
      %s96 = sphi 0, %s94
      %s97 = sphi 0, %s96
      %s111 = sphi 0, %s97
      %s115 = sphi 0, %s115
      %s117 = sphi 0, %s115
      %s118 = sphi 0, %s117
      %s132 = sphi 0, %s118
      %s138 = sphi 0, %s140
      %s141 = sphi 0, %s138
      %s142 = sphi 0, %s141
      %s158 = sphi 0, %s142
    $region4: #{tpu_custom_call.1} parent=1 // loop_header_branch
      %21 = sbr.rel (%p19) target = $region8
    $region5: #{tpu_custom_call.1} parent=1 // loop_body
      %s23 = ssub.s32 %s18, 1
      %s24 = ssub.s32 %s18, 2
      %s25 = sadd.s32 %s18, 1
      %s26 = ssub.s32 %s18, %s25
      %p27 = scmp.eq.s32.totalorder %s26, 0
      %s29 = sadd.s32 %s28, 1
      %s30 = scalar_select %p27, %s28, %s29
      %p33 = pneg %p27
      %p34 = scmp.eq.s32.totalorder %s18, 1
      %p35 = por %p33, %p34
      %p36 = scmp.ne.s32.totalorder %s28, %s31
      %p37 = scmp.eq.s32.totalorder %s18, 0
      %p38 = por %p36, %p37
      %p39 = scmp.ne.s32.totalorder %s28, %s31
      %p40 = scmp.eq.s32.totalorder %s23, 1
      %p41 = por %p39, %p40
      %p42 = scmp.ne.s32.totalorder %s31, %s32
      %p43 = scmp.eq.s32.totalorder %s23, 0
      %p44 = por %p42, %p43
      %p45 = scmp.ne.s32.totalorder %s31, %s32
      %p46 = scmp.eq.s32.totalorder %s24, 1
      %p47 = por %p45, %p46
      %p49 = scmp.ne.s32.totalorder %s32, %s48
      %p50 = scmp.eq.s32.totalorder %s24, 0
      %p51 = por %p49, %p50
      %s53 = sadd.s32 %s52, 1
      %p56 = scmp.eq.s32.totalorder %s18, 1
      %p57 = scmp.ne.s32.totalorder %s52, %s54
      %p58 = scmp.eq.s32.totalorder %s18, 0
      %p59 = por %p57, %p58
      %p60 = scmp.ne.s32.totalorder %s52, %s54
      %p61 = scmp.eq.s32.totalorder %s23, 1
      %p62 = por %p60, %p61
      %p63 = scmp.ne.s32.totalorder %s54, %s55
      %p64 = scmp.eq.s32.totalorder %s23, 0
      %p65 = por %p63, %p64
      %p66 = scmp.ne.s32.totalorder %s54, %s55
      %p67 = scmp.eq.s32.totalorder %s24, 1
      %p68 = por %p66, %p67
      %p70 = scmp.ne.s32.totalorder %s55, %s69
      %p71 = scmp.eq.s32.totalorder %s24, 0
      %p72 = por %p70, %p71
      %s74 = sadd.s32 %s73, 1
      %p77 = scmp.eq.s32.totalorder %s18, 1
      %p78 = scmp.ne.s32.totalorder %s73, %s75
      %p79 = scmp.eq.s32.totalorder %s18, 0
      %p80 = por %p78, %p79
      %p81 = scmp.ne.s32.totalorder %s73, %s75
      %p82 = scmp.eq.s32.totalorder %s23, 1
      %p83 = por %p81, %p82
      %p84 = scmp.ne.s32.totalorder %s75, %s76
      %p85 = scmp.eq.s32.totalorder %s23, 0
      %p86 = por %p84, %p85
      %p87 = scmp.ne.s32.totalorder %s75, %s76
      %p88 = scmp.eq.s32.totalorder %s24, 1
      %p89 = por %p87, %p88
      %p91 = scmp.ne.s32.totalorder %s76, %s90
      %p92 = scmp.eq.s32.totalorder %s24, 0
      %p93 = por %p91, %p92
      %s95 = sadd.s32 %s94, 1
      %p98 = scmp.eq.s32.totalorder %s18, 1
      %p99 = scmp.ne.s32.totalorder %s94, %s96
      %p100 = scmp.eq.s32.totalorder %s18, 0
      %p101 = por %p99, %p100
      %p102 = scmp.ne.s32.totalorder %s94, %s96
      %p103 = scmp.eq.s32.totalorder %s23, 1
      %p104 = por %p102, %p103
      %p105 = scmp.ne.s32.totalorder %s96, %s97
      %p106 = scmp.eq.s32.totalorder %s23, 0
      %p107 = por %p105, %p106
      %p108 = scmp.ne.s32.totalorder %s96, %s97
      %p109 = scmp.eq.s32.totalorder %s24, 1
      %p110 = por %p108, %p109
      %p112 = scmp.ne.s32.totalorder %s97, %s111
      %p113 = scmp.eq.s32.totalorder %s24, 0
      %p114 = por %p112, %p113
      %s116 = sadd.s32 %s115, 1
      %p119 = scmp.eq.s32.totalorder %s18, 1
      %p120 = scmp.ne.s32.totalorder %s115, %s117
      %p121 = scmp.eq.s32.totalorder %s18, 0
      %p122 = por %p120, %p121
      %p123 = scmp.ne.s32.totalorder %s115, %s117
      %p124 = scmp.eq.s32.totalorder %s23, 1
      %p125 = por %p123, %p124
      %p126 = scmp.ne.s32.totalorder %s117, %s118
      %p127 = scmp.eq.s32.totalorder %s23, 0
      %p128 = por %p126, %p127
      %p129 = scmp.ne.s32.totalorder %s117, %s118
      %p130 = scmp.eq.s32.totalorder %s24, 1
      %p131 = por %p129, %p130
      %p133 = scmp.ne.s32.totalorder %s118, %s132
      %p134 = scmp.eq.s32.totalorder %s24, 0
      %p135 = por %p133, %p134
      %s136 = ssub.s32 %s18, %s25
      %p137 = scmp.eq.s32.totalorder %s136, 0
      %s139 = sadd.s32 %s138, 1
      %s140 = scalar_select %p137, %s138, %s139
      %p143 = pneg %p137
      %p144 = scmp.eq.s32.totalorder %s18, 1
      %p145 = por %p143, %p144
      %p146 = scmp.ne.s32.totalorder %s138, %s141
      %p147 = scmp.eq.s32.totalorder %s18, 0
      %p148 = por %p146, %p147
      %p149 = scmp.ne.s32.totalorder %s138, %s141
      %p150 = scmp.eq.s32.totalorder %s23, 1
      %p151 = por %p149, %p150
      %p152 = scmp.ne.s32.totalorder %s141, %s142
      %p153 = scmp.eq.s32.totalorder %s23, 0
      %p154 = por %p152, %p153
      %p155 = scmp.ne.s32.totalorder %s141, %s142
      %p156 = scmp.eq.s32.totalorder %s24, 1
      %p157 = por %p155, %p156
      %p159 = scmp.ne.s32.totalorder %s142, %s158
      %p160 = scmp.eq.s32.totalorder %s24, 0
      %p161 = por %p159, %p160
      %p162 = scmp.le.s32.totalorder 1, %s18
      %p163 = scmp.lt.s32.totalorder %s18, 3
      %p164 = pnand %p162, %p163
      %p165 = pneg %p164
      // Predicated region
      $region9: #{tpu_custom_call.1} parent=5 // pred_check
        _
      $region10: #{tpu_custom_call.1} parent=5 // pred_check_branch
        %167 = sbr.rel (%p164) target = $region12
      $region11: #{tpu_custom_call.1} parent=5 // pred_region
        %s168 = ssub.s32 %s18, 1
        // Predicated region
        $region13: #{tpu_custom_call.1} parent=11 // pred_check
          %p169 = pneg %p65
        $region14: #{tpu_custom_call.1} parent=11 // pred_check_branch
          %171 = sbr.rel (%p169) target = $region16
        $region15: #{tpu_custom_call.1} parent=11 // pred_region
          %s173 = ssub.s32 3072, 3072
          %174 = vsyncadd [#allocation6], %s173
          %s175 = sshll.u32 [#allocation5], 4
          %s176 = int_to_ptr.vmem [resolvable:$true] %s175
          %181 = dma.hbm_to_vmem [thread:$0]  %s1, 3072, %s176, [#allocation6], 64, 64, 4
        $region16: #{tpu_custom_call.1} parent=11 // pred_fallthru
          _
        // Predicated region
        $region17: #{tpu_custom_call.1} parent=11 // pred_check
          %p182 = pneg %p86
        $region18: #{tpu_custom_call.1} parent=11 // pred_check_branch
          %184 = sbr.rel (%p182) target = $region20
        $region19: #{tpu_custom_call.1} parent=11 // pred_region
          _
        $region20: #{tpu_custom_call.1} parent=11 // pred_fallthru
          _
        // Predicated region
        $region21: #{tpu_custom_call.1} parent=11 // pred_check
          %p185 = pneg %p107
        $region22: #{tpu_custom_call.1} parent=11 // pred_check_branch
          %187 = sbr.rel (%p185) target = $region24
        $region23: #{tpu_custom_call.1} parent=11 // pred_region
          _
        $region24: #{tpu_custom_call.1} parent=11 // pred_fallthru
          _
        // Predicated region
        $region25: #{tpu_custom_call.1} parent=11 // pred_check
          %p188 = pneg %p128
        $region26: #{tpu_custom_call.1} parent=11 // pred_check_branch
          %190 = sbr.rel (%p188) target = $region28
        $region27: #{tpu_custom_call.1} parent=11 // pred_region
          _
        $region28: #{tpu_custom_call.1} parent=11 // pred_fallthru
          _
      $region12: #{tpu_custom_call.1} parent=5 // pred_fallthru
        _
      %p191 = scmp.lt.s32.totalorder %s18, 2
      // Predicated region
      $region29: #{tpu_custom_call.1} parent=5 // pred_check
        %p192 = pneg %p191
      $region30: #{tpu_custom_call.1} parent=5 // pred_check_branch
        %194 = sbr.rel (%p192) target = $region32
      $region31: #{tpu_custom_call.1} parent=5 // pred_region
        // Predicated region
        $region33: #{tpu_custom_call.1} parent=31 // pred_check
          %p195 = pneg %p38
        $region34: #{tpu_custom_call.1} parent=31 // pred_check_branch
          %197 = sbr.rel (%p195) target = $region36
        $region35: #{tpu_custom_call.1} parent=31 // pred_region
          %s198 = sand.u32 %s28, 1
          %s199 = scalar_lea.sflag [#allocation3], %s198
          %s200 = sand.u32 %s28, 1
          %s201 = smul.addr %s200, 128
          %s202 = scalar_lea.vmem [#allocation2], %s201
          %s203 = smul.u32 16, %s18
          %s205 = ssub.s32 2048, 2048
          %206 = vsyncadd %s199, %s205
          %s207 = smul.addr %s203, 128
          %s208 = scalar_lea.hbm %s0, %s207
          %s209 = sshll.u32 %s202, 4
          %s210 = int_to_ptr.vmem [resolvable:$true] %s209
          %215 = dma.hbm_to_vmem [thread:$0]  %s208, 2048, %s210, %s199, 128, 128, 8
        $region36: #{tpu_custom_call.1} parent=31 // pred_fallthru
          _
      $region32: #{tpu_custom_call.1} parent=5 // pred_fallthru
        _
      %p216 = scmp.le.s32.totalorder 1, %s18
      %p217 = scmp.lt.s32.totalorder %s18, 3
      %p218 = pnand %p216, %p217
      %p219 = pneg %p218
      // Predicated region
      $region37: #{tpu_custom_call.1} parent=5 // pred_check
        _
      $region38: #{tpu_custom_call.1} parent=5 // pred_check_branch
        %221 = sbr.rel (%p218) target = $region40
      $region39: #{tpu_custom_call.1} parent=5 // pred_region
        %s222 = ssub.s32 %s18, 1
        %s223 = sand.u32 %s31, 1
        %s224 = scalar_lea.sflag [#allocation3], %s223
        %s225 = sand.u32 %s31, 1
        %s226 = smul.addr %s225, 128
        %s227 = scalar_lea.vmem [#allocation2], %s226
        // Predicated region
        $region41: #{tpu_custom_call.1} parent=39 // pred_check
          %p228 = pneg %p44
        $region42: #{tpu_custom_call.1} parent=39 // pred_check_branch
          %230 = sbr.rel (%p228) target = $region44
        $region43: #{tpu_custom_call.1} parent=39 // pred_region
          %231 = dma.done %s224, 2048
        $region44: #{tpu_custom_call.1} parent=39 // pred_fallthru
          _
        // Predicated region
        $region45: #{tpu_custom_call.1} parent=39 // pred_check
          %p232 = pneg %p65
        $region46: #{tpu_custom_call.1} parent=39 // pred_check_branch
          %234 = sbr.rel (%p232) target = $region48
        $region47: #{tpu_custom_call.1} parent=39 // pred_region
          %235 = dma.done [#allocation6], 3072
        $region48: #{tpu_custom_call.1} parent=39 // pred_fallthru
          _
        %s236 = sand.u32 %s31, 1
        %s237 = scalar_lea.sflag [#allocation3], %s236
        %s238 = sand.u32 %s31, 1
        %s239 = smul.addr %s238, 128
        %s240 = scalar_lea.vmem [#allocation2], %s239
        %p241 = pneg %p44
        %p242 = pneg %p41
        %p243 = pneg %p65
        %p244 = pneg %p62
        %p245 = pneg %p86
        %p246 = pneg %p83
        %p247 = pneg %p107
        %p248 = pneg %p104
        %p249 = pneg %p128
        %p250 = pneg %p125
        %p251 = pneg %p154
        %p252 = pneg %p151
        %s253 = sand.u32 %s141, 1
        %s254 = scalar_lea.sflag [#allocation4], %s253
        %s255 = sand.u32 %s141, 1
        %s256 = smul.addr %s255, 128
        %s257 = scalar_lea.vmem [#allocation7], %s256
        %s258 = smul.u32 16, %s23
        %s259 = smul.u32 16, %s23
        %v261 = vlaneseq
        %v262 = vand.u32 %v261, 127
        %vm263 = vcmp.lt.s32.totalorder %v262, 32
        %v264 = vsel %vm263, 1, 0
        %v265 = vcvt.s32.f32 %v264
        %v266 = vld [vmem:[%s227] sm:$0xff]
        %v267 = vld [vmem:[%s227 + $0x8] sm:$0xff]
        %v268 = vld [vmem:[%s227 + $0x10] sm:$0xff]
        %v269 = vld [vmem:[%s227 + $0x18] sm:$0xff]
        %v270 = vld [vmem:[%s227 + $0x20] sm:$0xff]
        %v271 = vld [vmem:[%s227 + $0x28] sm:$0xff]
        %v272 = vld [vmem:[%s227 + $0x30] sm:$0xff]
        %v273 = vld [vmem:[%s227 + $0x38] sm:$0xff]
        %v274 = vld [vmem:[%s227 + $0x40] sm:$0xff]
        %v275 = vld [vmem:[%s227 + $0x48] sm:$0xff]
        %v276 = vld [vmem:[%s227 + $0x50] sm:$0xff]
        %v277 = vld [vmem:[%s227 + $0x58] sm:$0xff]
        %v278 = vld [vmem:[%s227 + $0x60] sm:$0xff]
        %v279 = vld [vmem:[%s227 + $0x68] sm:$0xff]
        %v280 = vld [vmem:[%s227 + $0x70] sm:$0xff]
        %v281 = vld [vmem:[%s227 + $0x78] sm:$0xff]
        %v282 = vpack.c.bf16 %v267, %v266
        %v283 = vpack.c.bf16 %v269, %v268
        %v284 = vpack.c.bf16 %v271, %v270
        %v285 = vpack.c.bf16 %v273, %v272
        %v286 = vpack.c.bf16 %v275, %v274
        %v287 = vpack.c.bf16 %v277, %v276
        %v288 = vpack.c.bf16 %v279, %v278
        %v289 = vpack.c.bf16 %v281, %v280
        %v290 = vld [vmem:[#allocation5] sm:$0xf]
        %v291 = vld [vmem:[#allocation5 + $0x4] sm:$0xf]
        %v292 = vld [vmem:[#allocation5 + $0x8] sm:$0xf]
        %v293 = vld [vmem:[#allocation5 + $0xc] sm:$0xf]
        %v294 = vld [vmem:[#allocation5 + $0x10] sm:$0xf]
        %v295 = vld [vmem:[#allocation5 + $0x14] sm:$0xf]
        %v296 = vld [vmem:[#allocation5 + $0x18] sm:$0xf]
        %v297 = vld [vmem:[#allocation5 + $0x1c] sm:$0xf]
        %v298 = vld [vmem:[#allocation5 + $0x20] sm:$0xf]
        %v299 = vld [vmem:[#allocation5 + $0x24] sm:$0xf]
        %v300 = vld [vmem:[#allocation5 + $0x28] sm:$0xf]
        %v301 = vld [vmem:[#allocation5 + $0x2c] sm:$0xf]
        %v302 = vld [vmem:[#allocation5 + $0x30] sm:$0xf]
        %v303 = vld [vmem:[#allocation5 + $0x34] sm:$0xf]
        %v304 = vld [vmem:[#allocation5 + $0x38] sm:$0xf]
        %v305 = vld [vmem:[#allocation5 + $0x3c] sm:$0xf]
        %v306 = vld [vmem:[%s2] sm:$0x1]
        %v308 = vlaneseq
        %v309 = vshrl.u32 %v308, 7
        %v310 = vsub.s32 0, %v309
        %v311 = vrot.slane %v306, %v310
        %v329 = vunpack.c.l.b16 %v290
        %v330 = vunpack.c.l.b16 %v291
        %v331 = vunpack.c.l.b16 %v292
        %v332 = vunpack.c.l.b16 %v293
        %v333 = vunpack.c.l.b16 %v294
        %v334 = vunpack.c.l.b16 %v295
        %v335 = vunpack.c.l.b16 %v296
        %v336 = vunpack.c.l.b16 %v297
        %v337 = vunpack.c.l.b16 %v298
        %v338 = vunpack.c.l.b16 %v299
        %v339 = vunpack.c.l.b16 %v300
        %v340 = vunpack.c.l.b16 %v301
        %v341 = vunpack.c.l.b16 %v302
        %v342 = vunpack.c.l.b16 %v303
        %v343 = vunpack.c.l.b16 %v304
        %v344 = vunpack.c.l.b16 %v305
        %v345 = vpack.c.b16 %v330, %v329
        %v346 = vpack.c.b16 %v332, %v331
        %v347 = vpack.c.b16 %v334, %v333
        %v348 = vpack.c.b16 %v336, %v335
        %v349 = vpack.c.b16 %v338, %v337
        %v350 = vpack.c.b16 %v340, %v339
        %v351 = vpack.c.b16 %v342, %v341
        %v352 = vpack.c.b16 %v344, %v343
        %361 = vmatprep.subr.bf16.mxu0 0
        %362 = vmatpush1.bf16.msra.mxu0 %v345
        %363 = vmatprep.subr.bf16.mxu0 0
        %364 = vmatpush1.bf16.msra.mxu0 %v346
        %365 = vmatprep.subr.bf16.mxu0 0
        %366 = vmatpush1.bf16.msra.mxu0 %v347
        %367 = vmatprep.subr.bf16.mxu0 0
        %368 = vmatpush1.bf16.msra.mxu0 %v348
        %369 = vmatprep.subr.bf16.mxu0 0
        %370 = vmatpush1.bf16.msra.mxu0 %v349
        %371 = vmatprep.subr.bf16.mxu0 0
        %372 = vmatpush1.bf16.msra.mxu0 %v350
        %373 = vmatprep.subr.bf16.mxu0 0
        %374 = vmatpush1.bf16.msra.mxu0 %v351
        %375 = vmatprep.subr.bf16.mxu0 0
        %376 = vmatpush1.bf16.msra.mxu0 %v352
        %377 = vmatprep.subr.bf16.mxu0 0
        %378 = vmatpush1.bf16.msra.mxu0 0
        %379 = vmatprep.subr.bf16.mxu0 0
        %380 = vmatpush1.bf16.msra.mxu0 0
        %381 = vmatprep.subr.bf16.mxu0 0
        %382 = vmatpush1.bf16.msra.mxu0 0
        %383 = vmatprep.subr.bf16.mxu0 0
        %384 = vmatpush1.bf16.msra.mxu0 0
        %385 = vmatprep.subr.bf16.mxu0 0
        %386 = vmatpush1.bf16.msra.mxu0 0
        %387 = vmatprep.subr.bf16.mxu0 0
        %388 = vmatpush1.bf16.msra.mxu0 0
        %389 = vmatprep.subr.bf16.mxu0 0
        %390 = vmatpush1.bf16.msra.mxu0 0
        %391 = vmatprep.subr.bf16.mxu0 0
        %392 = vmatpush1.bf16.msra.mxu0 0
        %393 = vmatprep.mubr.bf16.mxu0 0
        %394 = vmatmul.mubr.bf16.gmra.mrb[0].mxu0 %v282
        %v395 = vpop.f32.mrb[0].mxu0
        %v396 = vadd.f32 %v311, %v395
        %v397 = vpop.f32.mrb[0].mxu0
        %v398 = vpop.f32.mrb[0].mxu0
        %v399 = vadd.f32 %v311, %v398
        %v400 = vpop.f32.mrb[0].mxu0
        %401 = vmatprep.mubr.bf16.mxu0 0
        %402 = vmatmul.mubr.bf16.gmra.mrb[0].mxu0 %v283
        %v403 = vpop.f32.mrb[0].mxu0
        %v404 = vadd.f32 %v311, %v403
        %v405 = vpop.f32.mrb[0].mxu0
        %v406 = vpop.f32.mrb[0].mxu0
        %v407 = vadd.f32 %v311, %v406
        %v408 = vpop.f32.mrb[0].mxu0
        %409 = vmatprep.mubr.bf16.mxu0 0
        %410 = vmatmul.mubr.bf16.gmra.mrb[0].mxu0 %v284
        %v411 = vpop.f32.mrb[0].mxu0
        %v412 = vadd.f32 %v311, %v411
        %v413 = vpop.f32.mrb[0].mxu0
        %v414 = vpop.f32.mrb[0].mxu0
        %v415 = vadd.f32 %v311, %v414
        %v416 = vpop.f32.mrb[0].mxu0
        %417 = vmatprep.mubr.bf16.mxu0 0
        %418 = vmatmul.mubr.bf16.gmra.mrb[0].mxu0 %v285
        %v419 = vpop.f32.mrb[0].mxu0
        %v420 = vadd.f32 %v311, %v419
        %v421 = vpop.f32.mrb[0].mxu0
        %v422 = vpop.f32.mrb[0].mxu0
        %v423 = vadd.f32 %v311, %v422
        %v424 = vpop.f32.mrb[0].mxu0
        %425 = vmatprep.mubr.bf16.mxu0 0
        %426 = vmatmul.mubr.bf16.gmra.mrb[0].mxu0 %v286
        %v427 = vpop.f32.mrb[0].mxu0
        %v428 = vadd.f32 %v311, %v427
        %v429 = vpop.f32.mrb[0].mxu0
        %v430 = vpop.f32.mrb[0].mxu0
        %v431 = vadd.f32 %v311, %v430
        %v432 = vpop.f32.mrb[0].mxu0
        %433 = vmatprep.mubr.bf16.mxu0 0
        %434 = vmatmul.mubr.bf16.gmra.mrb[0].mxu0 %v287
        %v435 = vpop.f32.mrb[0].mxu0
        %v436 = vadd.f32 %v311, %v435
        %v437 = vpop.f32.mrb[0].mxu0
        %v438 = vpop.f32.mrb[0].mxu0
        %v439 = vadd.f32 %v311, %v438
        %v440 = vpop.f32.mrb[0].mxu0
        %441 = vmatprep.mubr.bf16.mxu0 0
        %442 = vmatmul.mubr.bf16.gmra.mrb[0].mxu0 %v288
        %v443 = vpop.f32.mrb[0].mxu0
        %v444 = vadd.f32 %v311, %v443
        %v445 = vpop.f32.mrb[0].mxu0
        %v446 = vpop.f32.mrb[0].mxu0
        %v447 = vadd.f32 %v311, %v446
        %v448 = vpop.f32.mrb[0].mxu0
        %449 = vmatprep.mubr.bf16.mxu0 0
        %450 = vmatmul.mubr.bf16.gmra.mrb[0].mxu0 %v289
        %v451 = vpop.f32.mrb[0].mxu0
        %v452 = vadd.f32 %v311, %v451
        %v453 = vpop.f32.mrb[0].mxu0
        %v454 = vpop.f32.mrb[0].mxu0
        %v455 = vadd.f32 %v311, %v454
        %v456 = vpop.f32.mrb[0].mxu0
        %457 = vdwg.mxu0
        %458 = vadd.xlane.f32.xlu0 %v396
        %v459 = vpop.xlane.xlu0 %458
        %460 = vadd.xlane.f32.xlu0 %v399
        %v461 = vpop.xlane.xlu0 %460
        %462 = vadd.xlane.f32.xlu0 %v404
        %v463 = vpop.xlane.xlu0 %462
        %464 = vadd.xlane.f32.xlu0 %v407
        %v465 = vpop.xlane.xlu0 %464
        %466 = vadd.xlane.f32.xlu0 %v412
        %v467 = vpop.xlane.xlu0 %466
        %468 = vadd.xlane.f32.xlu0 %v415
        %v469 = vpop.xlane.xlu0 %468
        %470 = vadd.xlane.f32.xlu0 %v420
        %v471 = vpop.xlane.xlu0 %470
        %472 = vadd.xlane.f32.xlu0 %v423
        %v473 = vpop.xlane.xlu0 %472
        %474 = vadd.xlane.f32.xlu0 %v428
        %v475 = vpop.xlane.xlu0 %474
        %476 = vadd.xlane.f32.xlu0 %v431
        %v477 = vpop.xlane.xlu0 %476
        %478 = vadd.xlane.f32.xlu0 %v436
        %v479 = vpop.xlane.xlu0 %478
        %480 = vadd.xlane.f32.xlu0 %v439
        %v481 = vpop.xlane.xlu0 %480
        %482 = vadd.xlane.f32.xlu0 %v444
        %v483 = vpop.xlane.xlu0 %482
        %484 = vadd.xlane.f32.xlu0 %v447
        %v485 = vpop.xlane.xlu0 %484
        %486 = vadd.xlane.f32.xlu0 %v452
        %v487 = vpop.xlane.xlu0 %486
        %488 = vadd.xlane.f32.xlu0 %v455
        %v489 = vpop.xlane.xlu0 %488
        %v490 = vmul.f32 %v459, 0.03125
        %v491 = vmul.f32 %v461, 0.03125
        %v492 = vmul.f32 %v463, 0.03125
        %v493 = vmul.f32 %v465, 0.03125
        %v494 = vmul.f32 %v467, 0.03125
        %v495 = vmul.f32 %v469, 0.03125
        %v496 = vmul.f32 %v471, 0.03125
        %v497 = vmul.f32 %v473, 0.03125
        %v498 = vmul.f32 %v475, 0.03125
        %v499 = vmul.f32 %v477, 0.03125
        %v500 = vmul.f32 %v479, 0.03125
        %v501 = vmul.f32 %v481, 0.03125
        %v502 = vmul.f32 %v483, 0.03125
        %v503 = vmul.f32 %v485, 0.03125
        %v504 = vmul.f32 %v487, 0.03125
        %v505 = vmul.f32 %v489, 0.03125
        %v506 = vsub.f32 %v396, %v490
        %v507 = vsub.f32 %v399, %v491
        %v508 = vsub.f32 %v404, %v492
        %v509 = vsub.f32 %v407, %v493
        %v510 = vsub.f32 %v412, %v494
        %v511 = vsub.f32 %v415, %v495
        %v512 = vsub.f32 %v420, %v496
        %v513 = vsub.f32 %v423, %v497
        %v514 = vsub.f32 %v428, %v498
        %v515 = vsub.f32 %v431, %v499
        %v516 = vsub.f32 %v436, %v500
        %v517 = vsub.f32 %v439, %v501
        %v518 = vsub.f32 %v444, %v502
        %v519 = vsub.f32 %v447, %v503
        %v520 = vsub.f32 %v452, %v504
        %v521 = vsub.f32 %v455, %v505
        %v522 = vmul.f32 %v506, %v265
        %v523 = vmul.f32 %v507, %v265
        %v524 = vmul.f32 %v508, %v265
        %v525 = vmul.f32 %v509, %v265
        %v526 = vmul.f32 %v510, %v265
        %v527 = vmul.f32 %v511, %v265
        %v528 = vmul.f32 %v512, %v265
        %v529 = vmul.f32 %v513, %v265
        %v530 = vmul.f32 %v514, %v265
        %v531 = vmul.f32 %v515, %v265
        %v532 = vmul.f32 %v516, %v265
        %v533 = vmul.f32 %v517, %v265
        %v534 = vmul.f32 %v518, %v265
        %v535 = vmul.f32 %v519, %v265
        %v536 = vmul.f32 %v520, %v265
        %v537 = vmul.f32 %v521, %v265
        %v538 = vmul.f32 %v522, %v522
        %v539 = vmul.f32 %v523, %v523
        %v540 = vmul.f32 %v524, %v524
        %v541 = vmul.f32 %v525, %v525
        %v542 = vmul.f32 %v526, %v526
        %v543 = vmul.f32 %v527, %v527
        %v544 = vmul.f32 %v528, %v528
        %v545 = vmul.f32 %v529, %v529
        %v546 = vmul.f32 %v530, %v530
        %v547 = vmul.f32 %v531, %v531
        %v548 = vmul.f32 %v532, %v532
        %v549 = vmul.f32 %v533, %v533
        %v550 = vmul.f32 %v534, %v534
        %v551 = vmul.f32 %v535, %v535
        %v552 = vmul.f32 %v536, %v536
        %v553 = vmul.f32 %v537, %v537
        %554 = vadd.xlane.f32.xlu0 %v538
        %v555 = vpop.xlane.xlu0 %554
        %556 = vadd.xlane.f32.xlu0 %v539
        %v557 = vpop.xlane.xlu0 %556
        %558 = vadd.xlane.f32.xlu0 %v540
        %v559 = vpop.xlane.xlu0 %558
        %560 = vadd.xlane.f32.xlu0 %v541
        %v561 = vpop.xlane.xlu0 %560
        %562 = vadd.xlane.f32.xlu0 %v542
        %v563 = vpop.xlane.xlu0 %562
        %564 = vadd.xlane.f32.xlu0 %v543
        %v565 = vpop.xlane.xlu0 %564
        %566 = vadd.xlane.f32.xlu0 %v544
        %v567 = vpop.xlane.xlu0 %566
        %568 = vadd.xlane.f32.xlu0 %v545
        %v569 = vpop.xlane.xlu0 %568
        %570 = vadd.xlane.f32.xlu0 %v546
        %v571 = vpop.xlane.xlu0 %570
        %572 = vadd.xlane.f32.xlu0 %v547
        %v573 = vpop.xlane.xlu0 %572
        %574 = vadd.xlane.f32.xlu0 %v548
        %v575 = vpop.xlane.xlu0 %574
        %576 = vadd.xlane.f32.xlu0 %v549
        %v577 = vpop.xlane.xlu0 %576
        %578 = vadd.xlane.f32.xlu0 %v550
        %v579 = vpop.xlane.xlu0 %578
        %580 = vadd.xlane.f32.xlu0 %v551
        %v581 = vpop.xlane.xlu0 %580
        %582 = vadd.xlane.f32.xlu0 %v552
        %v583 = vpop.xlane.xlu0 %582
        %584 = vadd.xlane.f32.xlu0 %v553
        %v585 = vpop.xlane.xlu0 %584
        %v586 = vmul.f32 %v555, 0.03125
        %v587 = vmul.f32 %v557, 0.03125
        %v588 = vmul.f32 %v559, 0.03125
        %v589 = vmul.f32 %v561, 0.03125
        %v590 = vmul.f32 %v563, 0.03125
        %v591 = vmul.f32 %v565, 0.03125
        %v592 = vmul.f32 %v567, 0.03125
        %v593 = vmul.f32 %v569, 0.03125
        %v594 = vmul.f32 %v571, 0.03125
        %v595 = vmul.f32 %v573, 0.03125
        %v596 = vmul.f32 %v575, 0.03125
        %v597 = vmul.f32 %v577, 0.03125
        %v598 = vmul.f32 %v579, 0.03125
        %v599 = vmul.f32 %v581, 0.03125
        %v600 = vmul.f32 %v583, 0.03125
        %v601 = vmul.f32 %v585, 0.03125
        %v602 = vadd.f32 %v586, 1e-05
        %v603 = vadd.f32 %v587, 1e-05
        %v604 = vadd.f32 %v588, 1e-05
        %v605 = vadd.f32 %v589, 1e-05
        %v606 = vadd.f32 %v590, 1e-05
        %v607 = vadd.f32 %v591, 1e-05
        %v608 = vadd.f32 %v592, 1e-05
        %v609 = vadd.f32 %v593, 1e-05
        %v610 = vadd.f32 %v594, 1e-05
        %v611 = vadd.f32 %v595, 1e-05
        %v612 = vadd.f32 %v596, 1e-05
        %v613 = vadd.f32 %v597, 1e-05
        %v614 = vadd.f32 %v598, 1e-05
        %v615 = vadd.f32 %v599, 1e-05
        %v616 = vadd.f32 %v600, 1e-05
        %v617 = vadd.f32 %v601, 1e-05
        %v618 = vrsqrt.pop %v602
        %v619 = vrsqrt.pop %v603
        %v620 = vrsqrt.pop %v604
        %v621 = vrsqrt.pop %v605
        %v622 = vrsqrt.pop %v606
        %v623 = vrsqrt.pop %v607
        %v624 = vrsqrt.pop %v608
        %v625 = vrsqrt.pop %v609
        %v626 = vrsqrt.pop %v610
        %v627 = vrsqrt.pop %v611
        %v628 = vrsqrt.pop %v612
        %v629 = vrsqrt.pop %v613
        %v630 = vrsqrt.pop %v614
        %v631 = vrsqrt.pop %v615
        %v632 = vrsqrt.pop %v616
        %v633 = vrsqrt.pop %v617
        %v634 = vmul.f32 %v522, %v618
        %v635 = vmul.f32 %v523, %v619
        %v636 = vmul.f32 %v524, %v620
        %v637 = vmul.f32 %v525, %v621
        %v638 = vmul.f32 %v526, %v622
        %v639 = vmul.f32 %v527, %v623
        %v640 = vmul.f32 %v528, %v624
        %v641 = vmul.f32 %v529, %v625
        %v642 = vmul.f32 %v530, %v626
        %v643 = vmul.f32 %v531, %v627
        %v644 = vmul.f32 %v532, %v628
        %v645 = vmul.f32 %v533, %v629
        %v646 = vmul.f32 %v534, %v630
        %v647 = vmul.f32 %v535, %v631
        %v648 = vmul.f32 %v536, %v632
        %v649 = vmul.f32 %v537, %v633
        %v650 = vld [vmem:[%s3] sm:$0x1]
        %v652 = vlaneseq
        %v653 = vshrl.u32 %v652, 7
        %v654 = vsub.s32 0, %v653
        %v655 = vrot.slane %v650, %v654
        %v657 = vmul.f32 %v634, %v655
        %v658 = vmul.f32 %v635, %v655
        %v659 = vmul.f32 %v636, %v655
        %v660 = vmul.f32 %v637, %v655
        %v661 = vmul.f32 %v638, %v655
        %v662 = vmul.f32 %v639, %v655
        %v663 = vmul.f32 %v640, %v655
        %v664 = vmul.f32 %v641, %v655
        %v665 = vmul.f32 %v642, %v655
        %v666 = vmul.f32 %v643, %v655
        %v667 = vmul.f32 %v644, %v655
        %v668 = vmul.f32 %v645, %v655
        %v669 = vmul.f32 %v646, %v655
        %v670 = vmul.f32 %v647, %v655
        %v671 = vmul.f32 %v648, %v655
        %v672 = vmul.f32 %v649, %v655
        %v673 = vld [vmem:[%s4] sm:$0x1]
        %v675 = vlaneseq
        %v676 = vshrl.u32 %v675, 7
        %v677 = vsub.s32 0, %v676
        %v678 = vrot.slane %v673, %v677
        %v680 = vadd.f32 %v657, %v678
        %v681 = vadd.f32 %v658, %v678
        %v682 = vadd.f32 %v659, %v678
        %v683 = vadd.f32 %v660, %v678
        %v684 = vadd.f32 %v661, %v678
        %v685 = vadd.f32 %v662, %v678
        %v686 = vadd.f32 %v663, %v678
        %v687 = vadd.f32 %v664, %v678
        %v688 = vadd.f32 %v665, %v678
        %v689 = vadd.f32 %v666, %v678
        %v690 = vadd.f32 %v667, %v678
        %v691 = vadd.f32 %v668, %v678
        %v692 = vadd.f32 %v669, %v678
        %v693 = vadd.f32 %v670, %v678
        %v694 = vadd.f32 %v671, %v678
        %v695 = vadd.f32 %v672, %v678
        %v696 = vmul.f32 %v680, 0.01
        %v697 = vmul.f32 %v681, 0.01
        %v698 = vmul.f32 %v682, 0.01
        %v699 = vmul.f32 %v683, 0.01
        %v700 = vmul.f32 %v684, 0.01
        %v701 = vmul.f32 %v685, 0.01
        %v702 = vmul.f32 %v686, 0.01
        %v703 = vmul.f32 %v687, 0.01
        %v704 = vmul.f32 %v688, 0.01
        %v705 = vmul.f32 %v689, 0.01
        %v706 = vmul.f32 %v690, 0.01
        %v707 = vmul.f32 %v691, 0.01
        %v708 = vmul.f32 %v692, 0.01
        %v709 = vmul.f32 %v693, 0.01
        %v710 = vmul.f32 %v694, 0.01
        %v711 = vmul.f32 %v695, 0.01
        %v712 = vmax.f32 %v680, %v696
        %v713 = vmax.f32 %v681, %v697
        %v714 = vmax.f32 %v682, %v698
        %v715 = vmax.f32 %v683, %v699
        %v716 = vmax.f32 %v684, %v700
        %v717 = vmax.f32 %v685, %v701
        %v718 = vmax.f32 %v686, %v702
        %v719 = vmax.f32 %v687, %v703
        %v720 = vmax.f32 %v688, %v704
        %v721 = vmax.f32 %v689, %v705
        %v722 = vmax.f32 %v690, %v706
        %v723 = vmax.f32 %v691, %v707
        %v724 = vmax.f32 %v692, %v708
        %v725 = vmax.f32 %v693, %v709
        %v726 = vmax.f32 %v694, %v710
        %v727 = vmax.f32 %v695, %v711
        %v728 = vpack.c.bf16 %v713, %v712
        %v729 = vpack.c.bf16 %v715, %v714
        %v730 = vpack.c.bf16 %v717, %v716
        %v731 = vpack.c.bf16 %v719, %v718
        %v732 = vpack.c.bf16 %v721, %v720
        %v733 = vpack.c.bf16 %v723, %v722
        %v734 = vpack.c.bf16 %v725, %v724
        %v735 = vpack.c.bf16 %v727, %v726
        %s736 = scalar_lea.vmem [#allocation5], 64
        %v737 = vld [vmem:[%s736] sm:$0xf]
        %v738 = vld [vmem:[%s736 + $0x4] sm:$0xf]
        %v739 = vld [vmem:[%s736 + $0x8] sm:$0xf]
        %v740 = vld [vmem:[%s736 + $0xc] sm:$0xf]
        %v741 = vld [vmem:[%s736 + $0x10] sm:$0xf]
        %v742 = vld [vmem:[%s736 + $0x14] sm:$0xf]
        %v743 = vld [vmem:[%s736 + $0x18] sm:$0xf]
        %v744 = vld [vmem:[%s736 + $0x1c] sm:$0xf]
        %v745 = vld [vmem:[%s736 + $0x20] sm:$0xf]
        %v746 = vld [vmem:[%s736 + $0x24] sm:$0xf]
        %v747 = vld [vmem:[%s736 + $0x28] sm:$0xf]
        %v748 = vld [vmem:[%s736 + $0x2c] sm:$0xf]
        %v749 = vld [vmem:[%s736 + $0x30] sm:$0xf]
        %v750 = vld [vmem:[%s736 + $0x34] sm:$0xf]
        %v751 = vld [vmem:[%s736 + $0x38] sm:$0xf]
        %v752 = vld [vmem:[%s736 + $0x3c] sm:$0xf]
        %s753 = scalar_lea.vmem %s2, 1
        %v754 = vld [vmem:[%s753] sm:$0x1]
        %v756 = vlaneseq
        %v757 = vshrl.u32 %v756, 7
        %v758 = vsub.s32 0, %v757
        %v759 = vrot.slane %v754, %v758
        %v777 = vunpack.c.l.b16 %v737
        %v778 = vunpack.c.l.b16 %v738
        %v779 = vunpack.c.l.b16 %v739
        %v780 = vunpack.c.l.b16 %v740
        %v781 = vunpack.c.l.b16 %v741
        %v782 = vunpack.c.l.b16 %v742
        %v783 = vunpack.c.l.b16 %v743
        %v784 = vunpack.c.l.b16 %v744
        %v785 = vunpack.c.l.b16 %v745
        %v786 = vunpack.c.l.b16 %v746
        %v787 = vunpack.c.l.b16 %v747
        %v788 = vunpack.c.l.b16 %v748
        %v789 = vunpack.c.l.b16 %v749
        %v790 = vunpack.c.l.b16 %v750
        %v791 = vunpack.c.l.b16 %v751
        %v792 = vunpack.c.l.b16 %v752
        %v793 = vpack.c.b16 %v778, %v777
        %v794 = vpack.c.b16 %v780, %v779
        %v795 = vpack.c.b16 %v782, %v781
        %v796 = vpack.c.b16 %v784, %v783
        %v797 = vpack.c.b16 %v786, %v785
        %v798 = vpack.c.b16 %v788, %v787
        %v799 = vpack.c.b16 %v790, %v789
        %v800 = vpack.c.b16 %v792, %v791
        %809 = vmatprep.subr.bf16.mxu0 0
        %810 = vmatpush1.bf16.msra.mxu0 %v793
        %811 = vmatprep.subr.bf16.mxu0 0
        %812 = vmatpush1.bf16.msra.mxu0 %v794
        %813 = vmatprep.subr.bf16.mxu0 0
        %814 = vmatpush1.bf16.msra.mxu0 %v795
        %815 = vmatprep.subr.bf16.mxu0 0
        %816 = vmatpush1.bf16.msra.mxu0 %v796
        %817 = vmatprep.subr.bf16.mxu0 0
        %818 = vmatpush1.bf16.msra.mxu0 %v797
        %819 = vmatprep.subr.bf16.mxu0 0
        %820 = vmatpush1.bf16.msra.mxu0 %v798
        %821 = vmatprep.subr.bf16.mxu0 0
        %822 = vmatpush1.bf16.msra.mxu0 %v799
        %823 = vmatprep.subr.bf16.mxu0 0
        %824 = vmatpush1.bf16.msra.mxu0 %v800
        %825 = vmatprep.subr.bf16.mxu0 0
        %826 = vmatpush1.bf16.msra.mxu0 0
        %827 = vmatprep.subr.bf16.mxu0 0
        %828 = vmatpush1.bf16.msra.mxu0 0
        %829 = vmatprep.subr.bf16.mxu0 0
        %830 = vmatpush1.bf16.msra.mxu0 0
        %831 = vmatprep.subr.bf16.mxu0 0
        %832 = vmatpush1.bf16.msra.mxu0 0
        %833 = vmatprep.subr.bf16.mxu0 0
        %834 = vmatpush1.bf16.msra.mxu0 0
        %835 = vmatprep.subr.bf16.mxu0 0
        %836 = vmatpush1.bf16.msra.mxu0 0
        %837 = vmatprep.subr.bf16.mxu0 0
        %838 = vmatpush1.bf16.msra.mxu0 0
        %839 = vmatprep.subr.bf16.mxu0 0
        %840 = vmatpush1.bf16.msra.mxu0 0
        %841 = vmatprep.mubr.bf16.mxu0 0
        %842 = vmatmul.mubr.bf16.gmra.mrb[0].mxu0 %v728
        %v843 = vpop.f32.mrb[0].mxu0
        %v844 = vadd.f32 %v759, %v843
        %v845 = vpop.f32.mrb[0].mxu0
        %v846 = vpop.f32.mrb[0].mxu0
        %v847 = vadd.f32 %v759, %v846
        %v848 = vpop.f32.mrb[0].mxu0
        %849 = vmatprep.mubr.bf16.mxu0 0
        %850 = vmatmul.mubr.bf16.gmra.mrb[0].mxu0 %v729
        %v851 = vpop.f32.mrb[0].mxu0
        %v852 = vadd.f32 %v759, %v851
        %v853 = vpop.f32.mrb[0].mxu0
        %v854 = vpop.f32.mrb[0].mxu0
        %v855 = vadd.f32 %v759, %v854
        %v856 = vpop.f32.mrb[0].mxu0
        %857 = vmatprep.mubr.bf16.mxu0 0
        %858 = vmatmul.mubr.bf16.gmra.mrb[0].mxu0 %v730
        %v859 = vpop.f32.mrb[0].mxu0
        %v860 = vadd.f32 %v759, %v859
        %v861 = vpop.f32.mrb[0].mxu0
        %v862 = vpop.f32.mrb[0].mxu0
        %v863 = vadd.f32 %v759, %v862
        %v864 = vpop.f32.mrb[0].mxu0
        %865 = vmatprep.mubr.bf16.mxu0 0
        %866 = vmatmul.mubr.bf16.gmra.mrb[0].mxu0 %v731
        %v867 = vpop.f32.mrb[0].mxu0
        %v868 = vadd.f32 %v759, %v867
        %v869 = vpop.f32.mrb[0].mxu0
        %v870 = vpop.f32.mrb[0].mxu0
        %v871 = vadd.f32 %v759, %v870
        %v872 = vpop.f32.mrb[0].mxu0
        %873 = vmatprep.mubr.bf16.mxu0 0
        %874 = vmatmul.mubr.bf16.gmra.mrb[0].mxu0 %v732
        %v875 = vpop.f32.mrb[0].mxu0
        %v876 = vadd.f32 %v759, %v875
        %v877 = vpop.f32.mrb[0].mxu0
        %v878 = vpop.f32.mrb[0].mxu0
        %v879 = vadd.f32 %v759, %v878
        %v880 = vpop.f32.mrb[0].mxu0
        %881 = vmatprep.mubr.bf16.mxu0 0
        %882 = vmatmul.mubr.bf16.gmra.mrb[0].mxu0 %v733
        %v883 = vpop.f32.mrb[0].mxu0
        %v884 = vadd.f32 %v759, %v883
        %v885 = vpop.f32.mrb[0].mxu0
        %v886 = vpop.f32.mrb[0].mxu0
        %v887 = vadd.f32 %v759, %v886
        %v888 = vpop.f32.mrb[0].mxu0
        %889 = vmatprep.mubr.bf16.mxu0 0
        %890 = vmatmul.mubr.bf16.gmra.mrb[0].mxu0 %v734
        %v891 = vpop.f32.mrb[0].mxu0
        %v892 = vadd.f32 %v759, %v891
        %v893 = vpop.f32.mrb[0].mxu0
        %v894 = vpop.f32.mrb[0].mxu0
        %v895 = vadd.f32 %v759, %v894
        %v896 = vpop.f32.mrb[0].mxu0
        %897 = vmatprep.mubr.bf16.mxu0 0
        %898 = vmatmul.mubr.bf16.gmra.mrb[0].mxu0 %v735
        %v899 = vpop.f32.mrb[0].mxu0
        %v900 = vadd.f32 %v759, %v899
        %v901 = vpop.f32.mrb[0].mxu0
        %v902 = vpop.f32.mrb[0].mxu0
        %v903 = vadd.f32 %v759, %v902
        %v904 = vpop.f32.mrb[0].mxu0
        %905 = vdwg.mxu0
        %906 = vadd.xlane.f32.xlu0 %v844
        %v907 = vpop.xlane.xlu0 %906
        %908 = vadd.xlane.f32.xlu0 %v847
        %v909 = vpop.xlane.xlu0 %908
        %910 = vadd.xlane.f32.xlu0 %v852
        %v911 = vpop.xlane.xlu0 %910
        %912 = vadd.xlane.f32.xlu0 %v855
        %v913 = vpop.xlane.xlu0 %912
        %914 = vadd.xlane.f32.xlu0 %v860
        %v915 = vpop.xlane.xlu0 %914
        %916 = vadd.xlane.f32.xlu0 %v863
        %v917 = vpop.xlane.xlu0 %916
        %918 = vadd.xlane.f32.xlu0 %v868
        %v919 = vpop.xlane.xlu0 %918
        %920 = vadd.xlane.f32.xlu0 %v871
        %v921 = vpop.xlane.xlu0 %920
        %922 = vadd.xlane.f32.xlu0 %v876
        %v923 = vpop.xlane.xlu0 %922
        %924 = vadd.xlane.f32.xlu0 %v879
        %v925 = vpop.xlane.xlu0 %924
        %926 = vadd.xlane.f32.xlu0 %v884
        %v927 = vpop.xlane.xlu0 %926
        %928 = vadd.xlane.f32.xlu0 %v887
        %v929 = vpop.xlane.xlu0 %928
        %930 = vadd.xlane.f32.xlu0 %v892
        %v931 = vpop.xlane.xlu0 %930
        %932 = vadd.xlane.f32.xlu0 %v895
        %v933 = vpop.xlane.xlu0 %932
        %934 = vadd.xlane.f32.xlu0 %v900
        %v935 = vpop.xlane.xlu0 %934
        %936 = vadd.xlane.f32.xlu0 %v903
        %v937 = vpop.xlane.xlu0 %936
        %v938 = vmul.f32 %v907, 0.03125
        %v939 = vmul.f32 %v909, 0.03125
        %v940 = vmul.f32 %v911, 0.03125
        %v941 = vmul.f32 %v913, 0.03125
        %v942 = vmul.f32 %v915, 0.03125
        %v943 = vmul.f32 %v917, 0.03125
        %v944 = vmul.f32 %v919, 0.03125
        %v945 = vmul.f32 %v921, 0.03125
        %v946 = vmul.f32 %v923, 0.03125
        %v947 = vmul.f32 %v925, 0.03125
        %v948 = vmul.f32 %v927, 0.03125
        %v949 = vmul.f32 %v929, 0.03125
        %v950 = vmul.f32 %v931, 0.03125
        %v951 = vmul.f32 %v933, 0.03125
        %v952 = vmul.f32 %v935, 0.03125
        %v953 = vmul.f32 %v937, 0.03125
        %v954 = vsub.f32 %v844, %v938
        %v955 = vsub.f32 %v847, %v939
        %v956 = vsub.f32 %v852, %v940
        %v957 = vsub.f32 %v855, %v941
        %v958 = vsub.f32 %v860, %v942
        %v959 = vsub.f32 %v863, %v943
        %v960 = vsub.f32 %v868, %v944
        %v961 = vsub.f32 %v871, %v945
        %v962 = vsub.f32 %v876, %v946
        %v963 = vsub.f32 %v879, %v947
        %v964 = vsub.f32 %v884, %v948
        %v965 = vsub.f32 %v887, %v949
        %v966 = vsub.f32 %v892, %v950
        %v967 = vsub.f32 %v895, %v951
        %v968 = vsub.f32 %v900, %v952
        %v969 = vsub.f32 %v903, %v953
        %v970 = vmul.f32 %v954, %v265
        %v971 = vmul.f32 %v955, %v265
        %v972 = vmul.f32 %v956, %v265
        %v973 = vmul.f32 %v957, %v265
        %v974 = vmul.f32 %v958, %v265
        %v975 = vmul.f32 %v959, %v265
        %v976 = vmul.f32 %v960, %v265
        %v977 = vmul.f32 %v961, %v265
        %v978 = vmul.f32 %v962, %v265
        %v979 = vmul.f32 %v963, %v265
        %v980 = vmul.f32 %v964, %v265
        %v981 = vmul.f32 %v965, %v265
        %v982 = vmul.f32 %v966, %v265
        %v983 = vmul.f32 %v967, %v265
        %v984 = vmul.f32 %v968, %v265
        %v985 = vmul.f32 %v969, %v265
        %v986 = vmul.f32 %v970, %v970
        %v987 = vmul.f32 %v971, %v971
        %v988 = vmul.f32 %v972, %v972
        %v989 = vmul.f32 %v973, %v973
        %v990 = vmul.f32 %v974, %v974
        %v991 = vmul.f32 %v975, %v975
        %v992 = vmul.f32 %v976, %v976
        %v993 = vmul.f32 %v977, %v977
        %v994 = vmul.f32 %v978, %v978
        %v995 = vmul.f32 %v979, %v979
        %v996 = vmul.f32 %v980, %v980
        %v997 = vmul.f32 %v981, %v981
        %v998 = vmul.f32 %v982, %v982
        %v999 = vmul.f32 %v983, %v983
        %v1000 = vmul.f32 %v984, %v984
        %v1001 = vmul.f32 %v985, %v985
        %1002 = vadd.xlane.f32.xlu0 %v986
        %v1003 = vpop.xlane.xlu0 %1002
        %1004 = vadd.xlane.f32.xlu0 %v987
        %v1005 = vpop.xlane.xlu0 %1004
        %1006 = vadd.xlane.f32.xlu0 %v988
        %v1007 = vpop.xlane.xlu0 %1006
        %1008 = vadd.xlane.f32.xlu0 %v989
        %v1009 = vpop.xlane.xlu0 %1008
        %1010 = vadd.xlane.f32.xlu0 %v990
        %v1011 = vpop.xlane.xlu0 %1010
        %1012 = vadd.xlane.f32.xlu0 %v991
        %v1013 = vpop.xlane.xlu0 %1012
        %1014 = vadd.xlane.f32.xlu0 %v992
        %v1015 = vpop.xlane.xlu0 %1014
        %1016 = vadd.xlane.f32.xlu0 %v993
        %v1017 = vpop.xlane.xlu0 %1016
        %1018 = vadd.xlane.f32.xlu0 %v994
        %v1019 = vpop.xlane.xlu0 %1018
        %1020 = vadd.xlane.f32.xlu0 %v995
        %v1021 = vpop.xlane.xlu0 %1020
        %1022 = vadd.xlane.f32.xlu0 %v996
        %v1023 = vpop.xlane.xlu0 %1022
        %1024 = vadd.xlane.f32.xlu0 %v997
        %v1025 = vpop.xlane.xlu0 %1024
        %1026 = vadd.xlane.f32.xlu0 %v998
        %v1027 = vpop.xlane.xlu0 %1026
        %1028 = vadd.xlane.f32.xlu0 %v999
        %v1029 = vpop.xlane.xlu0 %1028
        %1030 = vadd.xlane.f32.xlu0 %v1000
        %v1031 = vpop.xlane.xlu0 %1030
        %1032 = vadd.xlane.f32.xlu0 %v1001
        %v1033 = vpop.xlane.xlu0 %1032
        %v1034 = vmul.f32 %v1003, 0.03125
        %v1035 = vmul.f32 %v1005, 0.03125
        %v1036 = vmul.f32 %v1007, 0.03125
        %v1037 = vmul.f32 %v1009, 0.03125
        %v1038 = vmul.f32 %v1011, 0.03125
        %v1039 = vmul.f32 %v1013, 0.03125
        %v1040 = vmul.f32 %v1015, 0.03125
        %v1041 = vmul.f32 %v1017, 0.03125
        %v1042 = vmul.f32 %v1019, 0.03125
        %v1043 = vmul.f32 %v1021, 0.03125
        %v1044 = vmul.f32 %v1023, 0.03125
        %v1045 = vmul.f32 %v1025, 0.03125
        %v1046 = vmul.f32 %v1027, 0.03125
        %v1047 = vmul.f32 %v1029, 0.03125
        %v1048 = vmul.f32 %v1031, 0.03125
        %v1049 = vmul.f32 %v1033, 0.03125
        %v1050 = vadd.f32 %v1034, 1e-05
        %v1051 = vadd.f32 %v1035, 1e-05
        %v1052 = vadd.f32 %v1036, 1e-05
        %v1053 = vadd.f32 %v1037, 1e-05
        %v1054 = vadd.f32 %v1038, 1e-05
        %v1055 = vadd.f32 %v1039, 1e-05
        %v1056 = vadd.f32 %v1040, 1e-05
        %v1057 = vadd.f32 %v1041, 1e-05
        %v1058 = vadd.f32 %v1042, 1e-05
        %v1059 = vadd.f32 %v1043, 1e-05
        %v1060 = vadd.f32 %v1044, 1e-05
        %v1061 = vadd.f32 %v1045, 1e-05
        %v1062 = vadd.f32 %v1046, 1e-05
        %v1063 = vadd.f32 %v1047, 1e-05
        %v1064 = vadd.f32 %v1048, 1e-05
        %v1065 = vadd.f32 %v1049, 1e-05
        %v1066 = vrsqrt.pop %v1050
        %v1067 = vrsqrt.pop %v1051
        %v1068 = vrsqrt.pop %v1052
        %v1069 = vrsqrt.pop %v1053
        %v1070 = vrsqrt.pop %v1054
        %v1071 = vrsqrt.pop %v1055
        %v1072 = vrsqrt.pop %v1056
        %v1073 = vrsqrt.pop %v1057
        %v1074 = vrsqrt.pop %v1058
        %v1075 = vrsqrt.pop %v1059
        %v1076 = vrsqrt.pop %v1060
        %v1077 = vrsqrt.pop %v1061
        %v1078 = vrsqrt.pop %v1062
        %v1079 = vrsqrt.pop %v1063
        %v1080 = vrsqrt.pop %v1064
        %v1081 = vrsqrt.pop %v1065
        %v1082 = vmul.f32 %v970, %v1066
        %v1083 = vmul.f32 %v971, %v1067
        %v1084 = vmul.f32 %v972, %v1068
        %v1085 = vmul.f32 %v973, %v1069
        %v1086 = vmul.f32 %v974, %v1070
        %v1087 = vmul.f32 %v975, %v1071
        %v1088 = vmul.f32 %v976, %v1072
        %v1089 = vmul.f32 %v977, %v1073
        %v1090 = vmul.f32 %v978, %v1074
        %v1091 = vmul.f32 %v979, %v1075
        %v1092 = vmul.f32 %v980, %v1076
        %v1093 = vmul.f32 %v981, %v1077
        %v1094 = vmul.f32 %v982, %v1078
        %v1095 = vmul.f32 %v983, %v1079
        %v1096 = vmul.f32 %v984, %v1080
        %v1097 = vmul.f32 %v985, %v1081
        %s1098 = scalar_lea.vmem %s3, 1
        %v1099 = vld [vmem:[%s1098] sm:$0x1]
        %v1101 = vlaneseq
        %v1102 = vshrl.u32 %v1101, 7
        %v1103 = vsub.s32 0, %v1102
        %v1104 = vrot.slane %v1099, %v1103
        %v1106 = vmul.f32 %v1082, %v1104
        %v1107 = vmul.f32 %v1083, %v1104
        %v1108 = vmul.f32 %v1084, %v1104
        %v1109 = vmul.f32 %v1085, %v1104
        %v1110 = vmul.f32 %v1086, %v1104
        %v1111 = vmul.f32 %v1087, %v1104
        %v1112 = vmul.f32 %v1088, %v1104
        %v1113 = vmul.f32 %v1089, %v1104
        %v1114 = vmul.f32 %v1090, %v1104
        %v1115 = vmul.f32 %v1091, %v1104
        %v1116 = vmul.f32 %v1092, %v1104
        %v1117 = vmul.f32 %v1093, %v1104
        %v1118 = vmul.f32 %v1094, %v1104
        %v1119 = vmul.f32 %v1095, %v1104
        %v1120 = vmul.f32 %v1096, %v1104
        %v1121 = vmul.f32 %v1097, %v1104
        %s1122 = scalar_lea.vmem %s4, 1
        %v1123 = vld [vmem:[%s1122] sm:$0x1]
        %v1125 = vlaneseq
        %v1126 = vshrl.u32 %v1125, 7
        %v1127 = vsub.s32 0, %v1126
        %v1128 = vrot.slane %v1123, %v1127
        %v1130 = vadd.f32 %v1106, %v1128
        %v1131 = vadd.f32 %v1107, %v1128
        %v1132 = vadd.f32 %v1108, %v1128
        %v1133 = vadd.f32 %v1109, %v1128
        %v1134 = vadd.f32 %v1110, %v1128
        %v1135 = vadd.f32 %v1111, %v1128
        %v1136 = vadd.f32 %v1112, %v1128
        %v1137 = vadd.f32 %v1113, %v1128
        %v1138 = vadd.f32 %v1114, %v1128
        %v1139 = vadd.f32 %v1115, %v1128
        %v1140 = vadd.f32 %v1116, %v1128
        %v1141 = vadd.f32 %v1117, %v1128
        %v1142 = vadd.f32 %v1118, %v1128
        %v1143 = vadd.f32 %v1119, %v1128
        %v1144 = vadd.f32 %v1120, %v1128
        %v1145 = vadd.f32 %v1121, %v1128
        %v1146 = vmul.f32 %v1130, 0.01
        %v1147 = vmul.f32 %v1131, 0.01
        %v1148 = vmul.f32 %v1132, 0.01
        %v1149 = vmul.f32 %v1133, 0.01
        %v1150 = vmul.f32 %v1134, 0.01
        %v1151 = vmul.f32 %v1135, 0.01
        %v1152 = vmul.f32 %v1136, 0.01
        %v1153 = vmul.f32 %v1137, 0.01
        %v1154 = vmul.f32 %v1138, 0.01
        %v1155 = vmul.f32 %v1139, 0.01
        %v1156 = vmul.f32 %v1140, 0.01
        %v1157 = vmul.f32 %v1141, 0.01
        %v1158 = vmul.f32 %v1142, 0.01
        %v1159 = vmul.f32 %v1143, 0.01
        %v1160 = vmul.f32 %v1144, 0.01
        %v1161 = vmul.f32 %v1145, 0.01
        %v1162 = vmax.f32 %v1130, %v1146
        %v1163 = vmax.f32 %v1131, %v1147
        %v1164 = vmax.f32 %v1132, %v1148
        %v1165 = vmax.f32 %v1133, %v1149
        %v1166 = vmax.f32 %v1134, %v1150
        %v1167 = vmax.f32 %v1135, %v1151
        %v1168 = vmax.f32 %v1136, %v1152
        %v1169 = vmax.f32 %v1137, %v1153
        %v1170 = vmax.f32 %v1138, %v1154
        %v1171 = vmax.f32 %v1139, %v1155
        %v1172 = vmax.f32 %v1140, %v1156
        %v1173 = vmax.f32 %v1141, %v1157
        %v1174 = vmax.f32 %v1142, %v1158
        %v1175 = vmax.f32 %v1143, %v1159
        %v1176 = vmax.f32 %v1144, %v1160
        %v1177 = vmax.f32 %v1145, %v1161
        %v1178 = vpack.c.bf16 %v1163, %v1162
        %v1179 = vpack.c.bf16 %v1165, %v1164
        %v1180 = vpack.c.bf16 %v1167, %v1166
        %v1181 = vpack.c.bf16 %v1169, %v1168
        %v1182 = vpack.c.bf16 %v1171, %v1170
        %v1183 = vpack.c.bf16 %v1173, %v1172
        %v1184 = vpack.c.bf16 %v1175, %v1174
        %v1185 = vpack.c.bf16 %v1177, %v1176
        %s1186 = scalar_lea.vmem [#allocation5], 128
        %v1187 = vld [vmem:[%s1186] sm:$0xf]
        %v1188 = vld [vmem:[%s1186 + $0x4] sm:$0xf]
        %v1189 = vld [vmem:[%s1186 + $0x8] sm:$0xf]
        %v1190 = vld [vmem:[%s1186 + $0xc] sm:$0xf]
        %v1191 = vld [vmem:[%s1186 + $0x10] sm:$0xf]
        %v1192 = vld [vmem:[%s1186 + $0x14] sm:$0xf]
        %v1193 = vld [vmem:[%s1186 + $0x18] sm:$0xf]
        %v1194 = vld [vmem:[%s1186 + $0x1c] sm:$0xf]
        %v1195 = vld [vmem:[%s1186 + $0x20] sm:$0xf]
        %v1196 = vld [vmem:[%s1186 + $0x24] sm:$0xf]
        %v1197 = vld [vmem:[%s1186 + $0x28] sm:$0xf]
        %v1198 = vld [vmem:[%s1186 + $0x2c] sm:$0xf]
        %v1199 = vld [vmem:[%s1186 + $0x30] sm:$0xf]
        %v1200 = vld [vmem:[%s1186 + $0x34] sm:$0xf]
        %v1201 = vld [vmem:[%s1186 + $0x38] sm:$0xf]
        %v1202 = vld [vmem:[%s1186 + $0x3c] sm:$0xf]
        %s1203 = scalar_lea.vmem %s2, 2
        %v1204 = vld [vmem:[%s1203] sm:$0x1]
        %v1206 = vlaneseq
        %v1207 = vshrl.u32 %v1206, 7
        %v1208 = vsub.s32 0, %v1207
        %v1209 = vrot.slane %v1204, %v1208
        %v1227 = vunpack.c.l.b16 %v1187
        %v1228 = vunpack.c.l.b16 %v1188
        %v1229 = vunpack.c.l.b16 %v1189
        %v1230 = vunpack.c.l.b16 %v1190
        %v1231 = vunpack.c.l.b16 %v1191
        %v1232 = vunpack.c.l.b16 %v1192
        %v1233 = vunpack.c.l.b16 %v1193
        %v1234 = vunpack.c.l.b16 %v1194
        %v1235 = vunpack.c.l.b16 %v1195
        %v1236 = vunpack.c.l.b16 %v1196
        %v1237 = vunpack.c.l.b16 %v1197
        %v1238 = vunpack.c.l.b16 %v1198
        %v1239 = vunpack.c.l.b16 %v1199
        %v1240 = vunpack.c.l.b16 %v1200
        %v1241 = vunpack.c.l.b16 %v1201
        %v1242 = vunpack.c.l.b16 %v1202
        %v1243 = vpack.c.b16 %v1228, %v1227
        %v1244 = vpack.c.b16 %v1230, %v1229
        %v1245 = vpack.c.b16 %v1232, %v1231
        %v1246 = vpack.c.b16 %v1234, %v1233
        %v1247 = vpack.c.b16 %v1236, %v1235
        %v1248 = vpack.c.b16 %v1238, %v1237
        %v1249 = vpack.c.b16 %v1240, %v1239
        %v1250 = vpack.c.b16 %v1242, %v1241
        %1259 = vmatprep.subr.bf16.mxu0 0
        %1260 = vmatpush1.bf16.msra.mxu0 %v1243
        %1261 = vmatprep.subr.bf16.mxu0 0
        %1262 = vmatpush1.bf16.msra.mxu0 %v1244
        %1263 = vmatprep.subr.bf16.mxu0 0
        %1264 = vmatpush1.bf16.msra.mxu0 %v1245
        %1265 = vmatprep.subr.bf16.mxu0 0
        %1266 = vmatpush1.bf16.msra.mxu0 %v1246
        %1267 = vmatprep.subr.bf16.mxu0 0
        %1268 = vmatpush1.bf16.msra.mxu0 %v1247
        %1269 = vmatprep.subr.bf16.mxu0 0
        %1270 = vmatpush1.bf16.msra.mxu0 %v1248
        %1271 = vmatprep.subr.bf16.mxu0 0
        %1272 = vmatpush1.bf16.msra.mxu0 %v1249
        %1273 = vmatprep.subr.bf16.mxu0 0
        %1274 = vmatpush1.bf16.msra.mxu0 %v1250
        %1275 = vmatprep.subr.bf16.mxu0 0
        %1276 = vmatpush1.bf16.msra.mxu0 0
        %1277 = vmatprep.subr.bf16.mxu0 0
        %1278 = vmatpush1.bf16.msra.mxu0 0
        %1279 = vmatprep.subr.bf16.mxu0 0
        %1280 = vmatpush1.bf16.msra.mxu0 0
        %1281 = vmatprep.subr.bf16.mxu0 0
        %1282 = vmatpush1.bf16.msra.mxu0 0
        %1283 = vmatprep.subr.bf16.mxu0 0
        %1284 = vmatpush1.bf16.msra.mxu0 0
        %1285 = vmatprep.subr.bf16.mxu0 0
        %1286 = vmatpush1.bf16.msra.mxu0 0
        %1287 = vmatprep.subr.bf16.mxu0 0
        %1288 = vmatpush1.bf16.msra.mxu0 0
        %1289 = vmatprep.subr.bf16.mxu0 0
        %1290 = vmatpush1.bf16.msra.mxu0 0
        %1291 = vmatprep.mubr.bf16.mxu0 0
        %1292 = vmatmul.mubr.bf16.gmra.mrb[0].mxu0 %v1178
        %v1293 = vpop.f32.mrb[0].mxu0
        %v1294 = vadd.f32 %v1209, %v1293
        %v1295 = vpop.f32.mrb[0].mxu0
        %v1296 = vpop.f32.mrb[0].mxu0
        %v1297 = vadd.f32 %v1209, %v1296
        %v1298 = vpop.f32.mrb[0].mxu0
        %1299 = vmatprep.mubr.bf16.mxu0 0
        %1300 = vmatmul.mubr.bf16.gmra.mrb[0].mxu0 %v1179
        %v1301 = vpop.f32.mrb[0].mxu0
        %v1302 = vadd.f32 %v1209, %v1301
        %v1303 = vpop.f32.mrb[0].mxu0
        %v1304 = vpop.f32.mrb[0].mxu0
        %v1305 = vadd.f32 %v1209, %v1304
        %v1306 = vpop.f32.mrb[0].mxu0
        %1307 = vmatprep.mubr.bf16.mxu0 0
        %1308 = vmatmul.mubr.bf16.gmra.mrb[0].mxu0 %v1180
        %v1309 = vpop.f32.mrb[0].mxu0
        %v1310 = vadd.f32 %v1209, %v1309
        %v1311 = vpop.f32.mrb[0].mxu0
        %v1312 = vpop.f32.mrb[0].mxu0
        %v1313 = vadd.f32 %v1209, %v1312
        %v1314 = vpop.f32.mrb[0].mxu0
        %1315 = vmatprep.mubr.bf16.mxu0 0
        %1316 = vmatmul.mubr.bf16.gmra.mrb[0].mxu0 %v1181
        %v1317 = vpop.f32.mrb[0].mxu0
        %v1318 = vadd.f32 %v1209, %v1317
        %v1319 = vpop.f32.mrb[0].mxu0
        %v1320 = vpop.f32.mrb[0].mxu0
        %v1321 = vadd.f32 %v1209, %v1320
        %v1322 = vpop.f32.mrb[0].mxu0
        %1323 = vmatprep.mubr.bf16.mxu0 0
        %1324 = vmatmul.mubr.bf16.gmra.mrb[0].mxu0 %v1182
        %v1325 = vpop.f32.mrb[0].mxu0
        %v1326 = vadd.f32 %v1209, %v1325
        %v1327 = vpop.f32.mrb[0].mxu0
        %v1328 = vpop.f32.mrb[0].mxu0
        %v1329 = vadd.f32 %v1209, %v1328
        %v1330 = vpop.f32.mrb[0].mxu0
        %1331 = vmatprep.mubr.bf16.mxu0 0
        %1332 = vmatmul.mubr.bf16.gmra.mrb[0].mxu0 %v1183
        %v1333 = vpop.f32.mrb[0].mxu0
        %v1334 = vadd.f32 %v1209, %v1333
        %v1335 = vpop.f32.mrb[0].mxu0
        %v1336 = vpop.f32.mrb[0].mxu0
        %v1337 = vadd.f32 %v1209, %v1336
        %v1338 = vpop.f32.mrb[0].mxu0
        %1339 = vmatprep.mubr.bf16.mxu0 0
        %1340 = vmatmul.mubr.bf16.gmra.mrb[0].mxu0 %v1184
        %v1341 = vpop.f32.mrb[0].mxu0
        %v1342 = vadd.f32 %v1209, %v1341
        %v1343 = vpop.f32.mrb[0].mxu0
        %v1344 = vpop.f32.mrb[0].mxu0
        %v1345 = vadd.f32 %v1209, %v1344
        %v1346 = vpop.f32.mrb[0].mxu0
        %1347 = vmatprep.mubr.bf16.mxu0 0
        %1348 = vmatmul.mubr.bf16.gmra.mrb[0].mxu0 %v1185
        %v1349 = vpop.f32.mrb[0].mxu0
        %v1350 = vadd.f32 %v1209, %v1349
        %v1351 = vpop.f32.mrb[0].mxu0
        %v1352 = vpop.f32.mrb[0].mxu0
        %v1353 = vadd.f32 %v1209, %v1352
        %v1354 = vpop.f32.mrb[0].mxu0
        %1355 = vdwg.mxu0
        %v1356 = vtanh.pop %v1294
        %v1357 = vtanh.pop %v1297
        %v1358 = vtanh.pop %v1302
        %v1359 = vtanh.pop %v1305
        %v1360 = vtanh.pop %v1310
        %v1361 = vtanh.pop %v1313
        %v1362 = vtanh.pop %v1318
        %v1363 = vtanh.pop %v1321
        %v1364 = vtanh.pop %v1326
        %v1365 = vtanh.pop %v1329
        %v1366 = vtanh.pop %v1334
        %v1367 = vtanh.pop %v1337
        %v1368 = vtanh.pop %v1342
        %v1369 = vtanh.pop %v1345
        %v1370 = vtanh.pop %v1350
        %v1371 = vtanh.pop %v1353
        %1372 = vst [vmem:[%s257] sm:$0xff] %v1356
        %1373 = vst [vmem:[%s257 + $0x8] sm:$0xff] %v1357
        %1374 = vst [vmem:[%s257 + $0x10] sm:$0xff] %v1358
        %1375 = vst [vmem:[%s257 + $0x18] sm:$0xff] %v1359
        %1376 = vst [vmem:[%s257 + $0x20] sm:$0xff] %v1360
        %1377 = vst [vmem:[%s257 + $0x28] sm:$0xff] %v1361
        %1378 = vst [vmem:[%s257 + $0x30] sm:$0xff] %v1362
        %1379 = vst [vmem:[%s257 + $0x38] sm:$0xff] %v1363
        %1380 = vst [vmem:[%s257 + $0x40] sm:$0xff] %v1364
        %1381 = vst [vmem:[%s257 + $0x48] sm:$0xff] %v1365
        %1382 = vst [vmem:[%s257 + $0x50] sm:$0xff] %v1366
        %1383 = vst [vmem:[%s257 + $0x58] sm:$0xff] %v1367
        %1384 = vst [vmem:[%s257 + $0x60] sm:$0xff] %v1368
        %1385 = vst [vmem:[%s257 + $0x68] sm:$0xff] %v1369
        %1386 = vst [vmem:[%s257 + $0x70] sm:$0xff] %v1370
        %1387 = vst [vmem:[%s257 + $0x78] sm:$0xff] %v1371
        %s1388 = sand.u32 %s141, 1
        %s1389 = scalar_lea.sflag [#allocation4], %s1388
        %s1390 = sand.u32 %s141, 1
        %s1391 = smul.addr %s1390, 128
        %s1392 = scalar_lea.vmem [#allocation7], %s1391
        // Predicated region
        $region49: #{tpu_custom_call.1} parent=39 // pred_check
          %p1393 = pneg %p151
        $region50: #{tpu_custom_call.1} parent=39 // pred_check_branch
          %1395 = sbr.rel (%p1393) target = $region52
        $region51: #{tpu_custom_call.1} parent=39 // pred_region
          %s1396 = smul.u32 16, %s23
          %s1398 = ssub.s32 2048, 2048
          %1399 = vsyncadd %s1389, %s1398
          %s1400 = smul.addr %s1396, 128
          %s1401 = scalar_lea.hbm %s5, %s1400
          %s1402 = sshll.u32 %s1392, 4
          %s1403 = int_to_ptr.vmem [resolvable:$true] %s1402
          %1408 = dma.vmem_to_hbm [thread:$0]  %s1403, 2048, %s1401, %s1389, 128, 128, 8
        $region52: #{tpu_custom_call.1} parent=39 // pred_fallthru
          _
      $region40: #{tpu_custom_call.1} parent=5 // pred_fallthru
        _
      %p1409 = scmp.le.s32.totalorder 2, %s18
      // Predicated region
      $region53: #{tpu_custom_call.1} parent=5 // pred_check
        %p1410 = pneg %p1409
      $region54: #{tpu_custom_call.1} parent=5 // pred_check_branch
        %1412 = sbr.rel (%p1410) target = $region56
      $region55: #{tpu_custom_call.1} parent=5 // pred_region
        %s1413 = ssub.s32 %s18, 2
        // Predicated region
        $region57: #{tpu_custom_call.1} parent=55 // pred_check
          %p1414 = pneg %p157
        $region58: #{tpu_custom_call.1} parent=55 // pred_check_branch
          %1416 = sbr.rel (%p1414) target = $region60
        $region59: #{tpu_custom_call.1} parent=55 // pred_region
          %s1417 = sand.u32 %s142, 1
          %s1418 = scalar_lea.sflag [#allocation4], %s1417
          %s1419 = sand.u32 %s142, 1
          %s1420 = smul.addr %s1419, 128
          %s1421 = scalar_lea.vmem [#allocation7], %s1420
          %1422 = dma.done %s1418, 2048
        $region60: #{tpu_custom_call.1} parent=55 // pred_fallthru
          _
      $region56: #{tpu_custom_call.1} parent=5 // pred_fallthru
        _
    $region6: #{tpu_custom_call.1} parent=1 // loop_footer
      %s22 = sadd.s32 1, %s18
    $region7: #{tpu_custom_call.1} parent=1 // loop_footer_branch
      %17 = sbr.rel target = $region3
    $region8: #{tpu_custom_call.1} parent=1 // loop_exit
      _
    %1423 = vsyncpa [#allocation3], 1
    %s1424 = scalar_lea.sflag [#allocation3], 1
    %1425 = vsyncpa %s1424, 1
    %1426 = vsyncpa [#allocation6], 1
    %1427 = vsyncpa [#allocation4], 1
    %s1428 = scalar_lea.sflag [#allocation4], 1
    %1429 = vsyncpa %s1428, 1

</llo_original>
